<compile_context>
chip_gen: v7x
topology: tpu7x:2x2x1
jax: 0.10.0
libtpu: 0.0.40
codegen_flags: <defaults>
</compile_context>

<pallas_src>
import functools
import math

import jax
import jax.numpy as jnp
from jax.experimental import pallas as pl
from jax.experimental.pallas import tpu as pltpu


# Row indices inside the packed per-layer bias / LayerNorm array (L, 16, H).
_BQ, _BK, _BV, _BO, _LN1G, _LN1B, _BO2, _LN2G, _LN2B = range(9)
_BVEC_ROWS = 16  # padded to a multiple of 8 sublanes


def _layernorm(x, g, b, eps):
    mu = jnp.mean(x, axis=-1, keepdims=True)
    var = jnp.mean((x - mu) ** 2, axis=-1, keepdims=True)
    return (x - mu) * jax.lax.rsqrt(var + eps) * g + b


def _encoder_kernel(emb_ref, eg_ref, eb_ref,
                    wqkv_ref, wo_ref, wi_ref, wo2_ref,
                    bvec_ref, bi_ref,
                    o_ref, acc_ref, *, heads, eps):
    layer = pl.program_id(1)
    TB, S, H = emb_ref.shape
    M = TB * S
    dh = H // heads

    # Layer 0: embedding LayerNorm seeds the VMEM-resident activation carry.
    @pl.when(layer == 0)
    def _():
        e = emb_ref[...].astype(jnp.float32).reshape(M, H)
        acc_ref[...] = _layernorm(e, eg_ref[...], eb_ref[...], eps)

    x = acc_ref[...]                              # (M, H) f32, resident in VMEM

    bvec = bvec_ref[...]                          # (16, H) f32 packed vectors
    bq, bk, bv = bvec[_BQ:_BQ + 1], bvec[_BK:_BK + 1], bvec[_BV:_BV + 1]
    bo, ln1g, ln1b = bvec[_BO:_BO + 1], bvec[_LN1G:_LN1G + 1], bvec[_LN1B:_LN1B + 1]
    bo2, ln2g, ln2b = bvec[_BO2:_BO2 + 1], bvec[_LN2G:_LN2G + 1], bvec[_LN2B:_LN2B + 1]

    # ---- fused QKV projection: one MXU pass over all TB*S rows ----
    # (the 1/sqrt(dh) attention scale is folded into the Q columns of wqkv at init)
    x_bf = x.astype(jnp.bfloat16)
    qkv = jnp.dot(x_bf, wqkv_ref[...], preferred_element_type=jnp.float32)
    q = (qkv[:, :H] + bq).reshape(TB, S, H)
    k = (qkv[:, H:2 * H] + bk).reshape(TB, S, H)
    v = (qkv[:, 2 * H:] + bv).reshape(TB, S, H)

    # ---- multi-head attention, batched over the TB batch elements ----
    # Each head's context is accumulated straight into the attention output
    # projection (ctx_h @ wo[h*dh:(h+1)*dh, :]): no lane-axis concatenate.
    # TODO(synk): the tokenizer's padding attention mask is not modeled
    # (synthetic inputs have no padding); full attention is used.
    wo = wo_ref[...]
    attn = jnp.zeros((M, H), jnp.float32)
    for h in range(heads):
        sl = slice(h * dh, (h + 1) * dh)
        qh = q[:, :, sl].astype(jnp.bfloat16)
        kh = k[:, :, sl].astype(jnp.bfloat16)
        vh = v[:, :, sl].astype(jnp.bfloat16)
        s = jnp.einsum('bqd,bkd->bqk', qh, kh,
                       preferred_element_type=jnp.float32)
        m = jnp.max(s, axis=-1, keepdims=True)
        p = jnp.exp(s - m)
        p = p * pl.reciprocal(jnp.sum(p, axis=-1, keepdims=True), approx=True)
        ctx = jnp.einsum('bqk,bkd->bqd', p.astype(jnp.bfloat16), vh,
                         preferred_element_type=jnp.float32)
        attn += jnp.dot(ctx.reshape(M, dh).astype(jnp.bfloat16), wo[sl, :],
                        preferred_element_type=jnp.float32)

    # ---- attention output bias + residual + LayerNorm (fused) ----
    x1 = _layernorm(x + attn + bo, ln1g, ln1b, eps)

    # ---- feed-forward: GELU fused into the wi matmul epilogue ----
    # TODO(synk): HuggingFace BERT uses exact erf-GELU; tanh approximation here.
    hmid = jnp.dot(x1.astype(jnp.bfloat16), wi_ref[...],
                   preferred_element_type=jnp.float32) + bi_ref[...]
    hmid = jax.nn.gelu(hmid, approximate=True)
    ffn = jnp.dot(hmid.astype(jnp.bfloat16), wo2_ref[...],
                  preferred_element_type=jnp.float32)
    x2 = _layernorm(x1 + ffn + bo2, ln2g, ln2b, eps)

    acc_ref[...] = x2   # carry to the next layer (stays in VMEM)

    # Only the final layer flushes the activation back to HBM (bf16, one store
    # per batch block instead of one per layer).
    @pl.when(layer == pl.num_programs(1) - 1)
    def _():
        o_ref[...] = x2.reshape(TB, S, H).astype(o_ref.dtype)


# ---------------- deterministic parameter init (synthetic "BERT") ----------------
def init_params(key, *, vocab, max_pos, hidden, heads, inter, layers):
    H, I, L = hidden, inter, layers
    dh = H // heads

    def normal(k, shape):
        return 0.02 * jax.random.normal(k, shape, dtype=jnp.float32)

    keys = jax.random.split(key, 7)

    # Fold the attention 1/sqrt(dh) scale into the Q projection columns (free).
    wqkv = normal(keys[3], (L, H, 3 * H))
    wqkv = wqkv.at[:, :, :H].multiply(1.0 / math.sqrt(dh))

    # Pack the nine per-layer H-wide bias / LayerNorm vectors into one array:
    # one DMA per layer instead of nine sublane-padded (1, H) blocks.
    bvec = jnp.zeros((L, _BVEC_ROWS, H), jnp.float32)
    bvec = bvec.at[:, _LN1G].set(1.0)
    bvec = bvec.at[:, _LN2G].set(1.0)

    return {
        "word_emb": normal(keys[0], (vocab, H)),
        "pos_emb": normal(keys[1], (max_pos, H)),
        "type_emb": normal(keys[2], (2, H)),
        "emb_ln_g": jnp.ones((1, H), jnp.float32),
        "emb_ln_b": jnp.zeros((1, H), jnp.float32),
        # Matmul weights in bf16 (MXU-native, halves weight DMA); the packed
        # bias/LN vectors stay f32.
        "wqkv": wqkv.astype(jnp.bfloat16),
        "wo":   normal(keys[4], (L, H, H)).astype(jnp.bfloat16),
        "wi":   normal(keys[5], (L, H, I)).astype(jnp.bfloat16),
        "wo2":  normal(keys[6], (L, I, H)).astype(jnp.bfloat16),
        "bvec": bvec,
        "bi":   jnp.zeros((L, 1, I), jnp.float32),
    }


def _vmem_limit_bytes(TB, S, H, I):
    M = TB * S
    weights = 2 * 2 * (H * 3 * H + H * H + H * I + I * H)     # 2-buffered bf16 weights
    biases = 2 * 4 * (_BVEC_ROWS * H + 8 * I)                 # 2-buffered f32 bias packs
    act_io = 2 * 2 * 2 * (TB * S * H)                         # emb in + out (bf16, 2-buffered)
    scratch = 4 * M * H                                       # activation carry
    interm = 4 * M * (3 * H + I + 4 * H)                      # qkv / hmid / temporaries
    est = weights + biases + act_io + scratch + interm
    # Headroom x2, floor 16 MiB, cap 48 MiB so it also fits v7x's 64 MiB VMEM.
    return int(min(48 * 1024 * 1024, max(16 * 1024 * 1024, 2 * est)))


# ---------------- forward: token ids -> last_hidden_state [B, S, H] ----------------
def sql_encoder_forward(params, token_ids, cfg, *, batch_block=2):
    B, S = token_ids.shape
    H, NH, I, L = cfg["hidden"], cfg["heads"], cfg["inter"], cfg["layers"]
    TB = min(batch_block, B)
    assert B % TB == 0, "batch must be divisible by the batch block"

    # Embedding gather + sum is glue (data-dependent gather); everything after
    # runs inside the single fused Pallas encoder kernel.  The embedding is
    # handed to the kernel in bf16 to halve activation HBM traffic.
    emb = (jnp.take(params["word_emb"], token_ids, axis=0)
           + params["pos_emb"][:S][None, :, :]
           + params["type_emb"][0][None, None, :]).astype(jnp.bfloat16)

    x_map = lambda bb, l: (bb, 0, 0)   # per-batch-block activation, constant over layers
    w_map = lambda bb, l: (l, 0, 0)    # per-layer weight block
    c_map = lambda bb, l: (0, 0)       # shared embedding-LN block

    kernel = functools.partial(_encoder_kernel, heads=NH, eps=1e-12)

    return pl.pallas_call(
        kernel,
        out_shape=jax.ShapeDtypeStruct((B, S, H), jnp.bfloat16),
        grid=(B // TB, L),
        in_specs=[
            pl.BlockSpec((TB, S, H), x_map),             # embeddings (bf16)
            pl.BlockSpec((1, H), c_map),                 # emb LN gamma
            pl.BlockSpec((1, H), c_map),                 # emb LN beta
            pl.BlockSpec((None, H, 3 * H), w_map),       # fused QKV weight (bf16)
            pl.BlockSpec((None, H, H), w_map),           # attn out weight (bf16)
            pl.BlockSpec((None, H, I), w_map),           # FFN in weight (bf16)
            pl.BlockSpec((None, I, H), w_map),           # FFN out weight (bf16)
            pl.BlockSpec((None, _BVEC_ROWS, H), w_map),  # packed biases / LN (f32)
            pl.BlockSpec((None, 1, I), w_map),           # FFN in bias (f32)
        ],
        out_specs=pl.BlockSpec((TB, S, H), x_map),
        scratch_shapes=[pltpu.VMEM((TB * S, H), jnp.float32)],  # activation carry
        compiler_params=pltpu.CompilerParams(
            dimension_semantics=("parallel", "arbitrary"),
            vmem_limit_bytes=_vmem_limit_bytes(TB, S, H, I)),
    )(emb,
      params["emb_ln_g"], params["emb_ln_b"],
      params["wqkv"], params["wo"], params["wi"], params["wo2"],
      params["bvec"], params["bi"])


if __name__ == "__main__":
    # Small but lane-dense toy config (H multiple of 128, S multiple of 8,
    # batch-block axis of length 2 so both v7x TensorCores are used).
    cfg = dict(vocab=128, max_pos=64, hidden=128, heads=4, inter=256, layers=2)
    key = jax.random.PRNGKey(0)
    k_params, k_tok = jax.random.split(key)
    params = init_params(k_params, **cfg)

    # TODO(synk): BertTokenizer over a SQL string has no Pallas equivalent;
    # deterministic synthetic token ids stand in for tokenizer output.
    token_ids = jax.random.randint(k_tok, (4, 8), 0, cfg["vocab"], dtype=jnp.int32)

    fwd = jax.jit(functools.partial(sql_encoder_forward, cfg=cfg, batch_block=2))
    out = fwd(params, token_ids)
    jax.block_until_ready(out)
    assert out.shape == (4, 8, cfg["hidden"]) and out.dtype == jnp.bfloat16
    print("KERNEL_OK")
</pallas_src>

<mosaic_0001>
module attributes {stable_mosaic.version = 11 : i64} {
  func.func @_encoder_kernel(%arg0: i32, %arg1: i32, %arg2: memref<2x8x128xbf16, #tpu.memory_space<vmem>>, %arg3: memref<1x128xf32, #tpu.memory_space<vmem>>, %arg4: memref<1x128xf32, #tpu.memory_space<vmem>>, %arg5: memref<1x128x384xbf16, #tpu.memory_space<vmem>>, %arg6: memref<1x128x128xbf16, #tpu.memory_space<vmem>>, %arg7: memref<1x128x256xbf16, #tpu.memory_space<vmem>>, %arg8: memref<1x256x128xbf16, #tpu.memory_space<vmem>>, %arg9: memref<1x16x128xf32, #tpu.memory_space<vmem>>, %arg10: memref<1x1x256xf32, #tpu.memory_space<vmem>>, %arg11: memref<2x8x128xbf16, #tpu.memory_space<vmem>>, %arg12: memref<16x128xf32, #tpu.memory_space<vmem>>) attributes {dimension_semantics = [#tpu.dimension_semantics<parallel>, #tpu.dimension_semantics<arbitrary>], iteration_bounds = array<i64: 2, 2>, scalar_prefetch = 0 : i64, scratch_operands = 1 : i64, tpu.core_type = #tpu.core_type<tc>, window_params = [{transform_indices = @transform_0, window_bounds = array<i64: 2, 8, 128>}, {pipeline_mode = #tpu.pipeline_mode<synchronous>, transform_indices = @transform_1, window_bounds = array<i64: 1, 128>}, {pipeline_mode = #tpu.pipeline_mode<synchronous>, transform_indices = @transform_2, window_bounds = array<i64: 1, 128>}, {transform_indices = @transform_3, window_bounds = array<i64: 1, 128, 384>}, {transform_indices = @transform_4, window_bounds = array<i64: 1, 128, 128>}, {transform_indices = @transform_5, window_bounds = array<i64: 1, 128, 256>}, {transform_indices = @transform_6, window_bounds = array<i64: 1, 256, 128>}, {transform_indices = @transform_7, window_bounds = array<i64: 1, 16, 128>}, {transform_indices = @transform_8, window_bounds = array<i64: 1, 1, 256>}, {transform_indices = @transform_9, window_bounds = array<i64: 2, 8, 128>}]} {
    %c0_i32 = arith.constant 0 : i32
    %0 = arith.cmpi eq, %arg1, %c0_i32 : i32
    %1 = arith.extui %0 : i1 to i32
    %c0_i32_0 = arith.constant 0 : i32
    %2 = arith.cmpi ne, %1, %c0_i32_0 : i32
    scf.if %2 {
      %c0_60 = arith.constant 0 : index
      %c0_61 = arith.constant 0 : index
      %c0_62 = arith.constant 0 : index
      %209 = vector.load %arg2[%c0_60, %c0_61, %c0_62] : memref<2x8x128xbf16, #tpu.memory_space<vmem>>, vector<2x8x128xbf16>
      %210 = arith.extf %209 : vector<2x8x128xbf16> to vector<2x8x128xf32>
      %211 = vector.shape_cast %210 : vector<2x8x128xf32> to vector<16x128xf32>
      %c0_63 = arith.constant 0 : index
      %c0_64 = arith.constant 0 : index
      %212 = vector.load %arg3[%c0_63, %c0_64] : memref<1x128xf32, #tpu.memory_space<vmem>>, vector<1x128xf32>
      %c0_65 = arith.constant 0 : index
      %c0_66 = arith.constant 0 : index
      %213 = vector.load %arg4[%c0_65, %c0_66] : memref<1x128xf32, #tpu.memory_space<vmem>>, vector<1x128xf32>
      %cst_67 = arith.constant dense<0.000000e+00> : vector<16xf32>
      %214 = vector.multi_reduction <add>, %211, %cst_67 [1] : vector<16x128xf32> to vector<16xf32>
      %215 = vector.shape_cast %214 : vector<16xf32> to vector<16x1xf32>
      %cst_68 = arith.constant 1.280000e+02 : f32
      %216 = vector.broadcast %cst_68 : f32 to vector<16x1xf32>
      %217 = arith.divf %215, %216 : vector<16x1xf32>
      %218 = vector.broadcast %217 : vector<16x1xf32> to vector<16x128xf32>
      %219 = arith.subf %211, %218 : vector<16x128xf32>
      %220 = arith.mulf %219, %219 : vector<16x128xf32>
      %cst_69 = arith.constant dense<0.000000e+00> : vector<16xf32>
      %221 = vector.multi_reduction <add>, %220, %cst_69 [1] : vector<16x128xf32> to vector<16xf32>
      %222 = vector.shape_cast %221 : vector<16xf32> to vector<16x1xf32>
      %cst_70 = arith.constant 1.280000e+02 : f32
      %223 = vector.broadcast %cst_70 : f32 to vector<16x1xf32>
      %224 = arith.divf %222, %223 : vector<16x1xf32>
      %225 = vector.broadcast %217 : vector<16x1xf32> to vector<16x128xf32>
      %226 = arith.subf %211, %225 : vector<16x128xf32>
      %cst_71 = arith.constant 9.99999996E-13 : f32
      %227 = vector.broadcast %cst_71 : f32 to vector<16x1xf32>
      %228 = arith.addf %224, %227 : vector<16x1xf32>
      %229 = math.rsqrt %228 : vector<16x1xf32>
      %230 = vector.broadcast %229 : vector<16x1xf32> to vector<16x128xf32>
      %231 = arith.mulf %226, %230 : vector<16x128xf32>
      %232 = vector.broadcast %212 : vector<1x128xf32> to vector<16x128xf32>
      %233 = arith.mulf %231, %232 : vector<16x128xf32>
      %234 = vector.broadcast %213 : vector<1x128xf32> to vector<16x128xf32>
      %235 = arith.addf %233, %234 : vector<16x128xf32>
      %c0_72 = arith.constant 0 : index
      %c0_73 = arith.constant 0 : index
      %236 = vector.load %arg12[%c0_72, %c0_73] : memref<16x128xf32, #tpu.memory_space<vmem>>, vector<16x128xf32>
      tpu.vector_store %arg12[%c0_72, %c0_73], %235 {strides = array<i32>} : memref<16x128xf32, #tpu.memory_space<vmem>>, vector<16x128xf32>,
    } else {
    }
    %c0 = arith.constant 0 : index
    %c0_1 = arith.constant 0 : index
    %3 = vector.load %arg12[%c0, %c0_1] : memref<16x128xf32, #tpu.memory_space<vmem>>, vector<16x128xf32>
    %c0_2 = arith.constant 0 : index
    %c0_3 = arith.constant 0 : index
    %c0_4 = arith.constant 0 : index
    %4 = vector.load %arg9[%c0_2, %c0_3, %c0_4] : memref<1x16x128xf32, #tpu.memory_space<vmem>>, vector<1x16x128xf32>
    %5 = vector.shape_cast %4 : vector<1x16x128xf32> to vector<16x128xf32>
    %6 = vector.extract_strided_slice %5 {offsets = [0, 0], sizes = [1, 128], strides = [1, 1]} : vector<16x128xf32> to vector<1x128xf32>
    %7 = vector.extract_strided_slice %5 {offsets = [1, 0], sizes = [1, 128], strides = [1, 1]} : vector<16x128xf32> to vector<1x128xf32>
    %8 = vector.extract_strided_slice %5 {offsets = [2, 0], sizes = [1, 128], strides = [1, 1]} : vector<16x128xf32> to vector<1x128xf32>
    %9 = vector.extract_strided_slice %5 {offsets = [3, 0], sizes = [1, 128], strides = [1, 1]} : vector<16x128xf32> to vector<1x128xf32>
    %10 = vector.extract_strided_slice %5 {offsets = [4, 0], sizes = [1, 128], strides = [1, 1]} : vector<16x128xf32> to vector<1x128xf32>
    %11 = vector.extract_strided_slice %5 {offsets = [5, 0], sizes = [1, 128], strides = [1, 1]} : vector<16x128xf32> to vector<1x128xf32>
    %12 = vector.extract_strided_slice %5 {offsets = [6, 0], sizes = [1, 128], strides = [1, 1]} : vector<16x128xf32> to vector<1x128xf32>
    %13 = vector.extract_strided_slice %5 {offsets = [7, 0], sizes = [1, 128], strides = [1, 1]} : vector<16x128xf32> to vector<1x128xf32>
    %14 = vector.extract_strided_slice %5 {offsets = [8, 0], sizes = [1, 128], strides = [1, 1]} : vector<16x128xf32> to vector<1x128xf32>
    %15 = arith.truncf %3 : vector<16x128xf32> to vector<16x128xbf16>
    %c0_5 = arith.constant 0 : index
    %c0_6 = arith.constant 0 : index
    %c0_7 = arith.constant 0 : index
    %16 = vector.load %arg5[%c0_5, %c0_6, %c0_7] : memref<1x128x384xbf16, #tpu.memory_space<vmem>>, vector<1x128x384xbf16>
    %17 = vector.shape_cast %16 : vector<1x128x384xbf16> to vector<128x384xbf16>
    %cst = arith.constant dense<0.000000e+00> : vector<16x384xf32>
    %18 = tpu.matmul %15, %17, %cst {dimension_numbers = #tpu.dot_dimension_numbers<[1], [0], [0], [1], [0, 0, 1, 1], [], []>} : vector<16x128xbf16>, vector<128x384xbf16>, vector<16x384xf32> -> vector<16x384xf32>
    %19 = vector.extract_strided_slice %18 {offsets = [0, 0], sizes = [16, 128], strides = [1, 1]} : vector<16x384xf32> to vector<16x128xf32>
    %20 = vector.broadcast %6 : vector<1x128xf32> to vector<16x128xf32>
    %21 = arith.addf %19, %20 : vector<16x128xf32>
    %22 = vector.shape_cast %21 : vector<16x128xf32> to vector<2x8x128xf32>
    %23 = vector.extract_strided_slice %18 {offsets = [0, 128], sizes = [16, 128], strides = [1, 1]} : vector<16x384xf32> to vector<16x128xf32>
    %24 = vector.broadcast %7 : vector<1x128xf32> to vector<16x128xf32>
    %25 = arith.addf %23, %24 : vector<16x128xf32>
    %26 = vector.shape_cast %25 : vector<16x128xf32> to vector<2x8x128xf32>
    %27 = vector.extract_strided_slice %18 {offsets = [0, 256], sizes = [16, 128], strides = [1, 1]} : vector<16x384xf32> to vector<16x128xf32>
    %28 = vector.broadcast %8 : vector<1x128xf32> to vector<16x128xf32>
    %29 = arith.addf %27, %28 : vector<16x128xf32>
    %30 = vector.shape_cast %29 : vector<16x128xf32> to vector<2x8x128xf32>
    %c0_8 = arith.constant 0 : index
    %c0_9 = arith.constant 0 : index
    %c0_10 = arith.constant 0 : index
    %31 = vector.load %arg6[%c0_8, %c0_9, %c0_10] : memref<1x128x128xbf16, #tpu.memory_space<vmem>>, vector<1x128x128xbf16>
    %32 = vector.shape_cast %31 : vector<1x128x128xbf16> to vector<128x128xbf16>
    %cst_11 = arith.constant 0.000000e+00 : f32
    %33 = vector.broadcast %cst_11 : f32 to vector<16x128xf32>
    %34 = vector.extract_strided_slice %22 {offsets = [0, 0, 0], sizes = [2, 8, 32], strides = [1, 1, 1]} : vector<2x8x128xf32> to vector<2x8x32xf32>
    %35 = arith.truncf %34 : vector<2x8x32xf32> to vector<2x8x32xbf16>
    %36 = vector.extract_strided_slice %26 {offsets = [0, 0, 0], sizes = [2, 8, 32], strides = [1, 1, 1]} : vector<2x8x128xf32> to vector<2x8x32xf32>
    %37 = arith.truncf %36 : vector<2x8x32xf32> to vector<2x8x32xbf16>
    %38 = vector.extract_strided_slice %30 {offsets = [0, 0, 0], sizes = [2, 8, 32], strides = [1, 1, 1]} : vector<2x8x128xf32> to vector<2x8x32xf32>
    %39 = arith.truncf %38 : vector<2x8x32xf32> to vector<2x8x32xbf16>
    "tpu.trace_start"() <{level = 10 : i32, message = "bqd,bkd->bqk"}> : () -> ()
    %cst_12 = arith.constant dense<0.000000e+00> : vector<2x8x8xf32>
    %40 = tpu.matmul %35, %37, %cst_12 {dimension_numbers = #tpu.dot_dimension_numbers<[2], [2], [1], [1], [0, 0, 0, 1, 1, 1], [0], [0]>} : vector<2x8x32xbf16>, vector<2x8x32xbf16>, vector<2x8x8xf32> -> vector<2x8x8xf32>
    "tpu.trace_stop"() : () -> ()
    %cst_13 = arith.constant dense<0xFF800000> : vector<2x8xf32>
    %41 = vector.multi_reduction <maximumf>, %40, %cst_13 [2] : vector<2x8x8xf32> to vector<2x8xf32>
    %42 = vector.shape_cast %41 : vector<2x8xf32> to vector<2x8x1xf32>
    %43 = vector.broadcast %42 : vector<2x8x1xf32> to vector<2x8x8xf32>
    %44 = arith.subf %40, %43 : vector<2x8x8xf32>
    %45 = math.exp %44 : vector<2x8x8xf32>
    %cst_14 = arith.constant dense<0.000000e+00> : vector<2x8xf32>
    %46 = vector.multi_reduction <add>, %45, %cst_14 [2] : vector<2x8x8xf32> to vector<2x8xf32>
    %47 = vector.shape_cast %46 : vector<2x8xf32> to vector<2x8x1xf32>
    %48 = tpu.reciprocal %47 {approx = true} : vector<2x8x1xf32> -> vector<2x8x1xf32>
    %49 = vector.broadcast %48 : vector<2x8x1xf32> to vector<2x8x8xf32>
    %50 = arith.mulf %45, %49 : vector<2x8x8xf32>
    %51 = arith.truncf %50 : vector<2x8x8xf32> to vector<2x8x8xbf16>
    "tpu.trace_start"() <{level = 10 : i32, message = "bqk,bkd->bqd"}> : () -> ()
    %cst_15 = arith.constant dense<0.000000e+00> : vector<2x8x32xf32>
    %52 = tpu.matmul %51, %39, %cst_15 {dimension_numbers = #tpu.dot_dimension_numbers<[2], [1], [1], [2], [0, 0, 0, 1, 1, 2], [0], [0]>} : vector<2x8x8xbf16>, vector<2x8x32xbf16>, vector<2x8x32xf32> -> vector<2x8x32xf32>
    "tpu.trace_stop"() : () -> ()
    %53 = vector.shape_cast %52 : vector<2x8x32xf32> to vector<16x32xf32>
    %54 = arith.truncf %53 : vector<16x32xf32> to vector<16x32xbf16>
    %55 = vector.extract_strided_slice %32 {offsets = [0, 0], sizes = [32, 128], strides = [1, 1]} : vector<128x128xbf16> to vector<32x128xbf16>
    %cst_16 = arith.constant dense<0.000000e+00> : vector<16x128xf32>
    %56 = tpu.matmul %54, %55, %cst_16 {dimension_numbers = #tpu.dot_dimension_numbers<[1], [0], [0], [1], [0, 0, 1, 1], [], []>} : vector<16x32xbf16>, vector<32x128xbf16>, vector<16x128xf32> -> vector<16x128xf32>
    %57 = arith.addf %33, %56 : vector<16x128xf32>
    %58 = vector.extract_strided_slice %22 {offsets = [0, 0, 32], sizes = [2, 8, 32], strides = [1, 1, 1]} : vector<2x8x128xf32> to vector<2x8x32xf32>
    %59 = arith.truncf %58 : vector<2x8x32xf32> to vector<2x8x32xbf16>
    %60 = vector.extract_strided_slice %26 {offsets = [0, 0, 32], sizes = [2, 8, 32], strides = [1, 1, 1]} : vector<2x8x128xf32> to vector<2x8x32xf32>
    %61 = arith.truncf %60 : vector<2x8x32xf32> to vector<2x8x32xbf16>
    %62 = vector.extract_strided_slice %30 {offsets = [0, 0, 32], sizes = [2, 8, 32], strides = [1, 1, 1]} : vector<2x8x128xf32> to vector<2x8x32xf32>
    %63 = arith.truncf %62 : vector<2x8x32xf32> to vector<2x8x32xbf16>
    "tpu.trace_start"() <{level = 10 : i32, message = "bqd,bkd->bqk"}> : () -> ()
    %cst_17 = arith.constant dense<0.000000e+00> : vector<2x8x8xf32>
    %64 = tpu.matmul %59, %61, %cst_17 {dimension_numbers = #tpu.dot_dimension_numbers<[2], [2], [1], [1], [0, 0, 0, 1, 1, 1], [0], [0]>} : vector<2x8x32xbf16>, vector<2x8x32xbf16>, vector<2x8x8xf32> -> vector<2x8x8xf32>
    "tpu.trace_stop"() : () -> ()
    %cst_18 = arith.constant dense<0xFF800000> : vector<2x8xf32>
    %65 = vector.multi_reduction <maximumf>, %64, %cst_18 [2] : vector<2x8x8xf32> to vector<2x8xf32>
    %66 = vector.shape_cast %65 : vector<2x8xf32> to vector<2x8x1xf32>
    %67 = vector.broadcast %66 : vector<2x8x1xf32> to vector<2x8x8xf32>
    %68 = arith.subf %64, %67 : vector<2x8x8xf32>
    %69 = math.exp %68 : vector<2x8x8xf32>
    %cst_19 = arith.constant dense<0.000000e+00> : vector<2x8xf32>
    %70 = vector.multi_reduction <add>, %69, %cst_19 [2] : vector<2x8x8xf32> to vector<2x8xf32>
    %71 = vector.shape_cast %70 : vector<2x8xf32> to vector<2x8x1xf32>
    %72 = tpu.reciprocal %71 {approx = true} : vector<2x8x1xf32> -> vector<2x8x1xf32>
    %73 = vector.broadcast %72 : vector<2x8x1xf32> to vector<2x8x8xf32>
    %74 = arith.mulf %69, %73 : vector<2x8x8xf32>
    %75 = arith.truncf %74 : vector<2x8x8xf32> to vector<2x8x8xbf16>
    "tpu.trace_start"() <{level = 10 : i32, message = "bqk,bkd->bqd"}> : () -> ()
    %cst_20 = arith.constant dense<0.000000e+00> : vector<2x8x32xf32>
    %76 = tpu.matmul %75, %63, %cst_20 {dimension_numbers = #tpu.dot_dimension_numbers<[2], [1], [1], [2], [0, 0, 0, 1, 1, 2], [0], [0]>} : vector<2x8x8xbf16>, vector<2x8x32xbf16>, vector<2x8x32xf32> -> vector<2x8x32xf32>
    "tpu.trace_stop"() : () -> ()
    %77 = vector.shape_cast %76 : vector<2x8x32xf32> to vector<16x32xf32>
    %78 = arith.truncf %77 : vector<16x32xf32> to vector<16x32xbf16>
    %79 = vector.extract_strided_slice %32 {offsets = [32, 0], sizes = [32, 128], strides = [1, 1]} : vector<128x128xbf16> to vector<32x128xbf16>
    %cst_21 = arith.constant dense<0.000000e+00> : vector<16x128xf32>
    %80 = tpu.matmul %78, %79, %cst_21 {dimension_numbers = #tpu.dot_dimension_numbers<[1], [0], [0], [1], [0, 0, 1, 1], [], []>} : vector<16x32xbf16>, vector<32x128xbf16>, vector<16x128xf32> -> vector<16x128xf32>
    %81 = arith.addf %57, %80 : vector<16x128xf32>
    %82 = vector.extract_strided_slice %22 {offsets = [0, 0, 64], sizes = [2, 8, 32], strides = [1, 1, 1]} : vector<2x8x128xf32> to vector<2x8x32xf32>
    %83 = arith.truncf %82 : vector<2x8x32xf32> to vector<2x8x32xbf16>
    %84 = vector.extract_strided_slice %26 {offsets = [0, 0, 64], sizes = [2, 8, 32], strides = [1, 1, 1]} : vector<2x8x128xf32> to vector<2x8x32xf32>
    %85 = arith.truncf %84 : vector<2x8x32xf32> to vector<2x8x32xbf16>
    %86 = vector.extract_strided_slice %30 {offsets = [0, 0, 64], sizes = [2, 8, 32], strides = [1, 1, 1]} : vector<2x8x128xf32> to vector<2x8x32xf32>
    %87 = arith.truncf %86 : vector<2x8x32xf32> to vector<2x8x32xbf16>
    "tpu.trace_start"() <{level = 10 : i32, message = "bqd,bkd->bqk"}> : () -> ()
    %cst_22 = arith.constant dense<0.000000e+00> : vector<2x8x8xf32>
    %88 = tpu.matmul %83, %85, %cst_22 {dimension_numbers = #tpu.dot_dimension_numbers<[2], [2], [1], [1], [0, 0, 0, 1, 1, 1], [0], [0]>} : vector<2x8x32xbf16>, vector<2x8x32xbf16>, vector<2x8x8xf32> -> vector<2x8x8xf32>
    "tpu.trace_stop"() : () -> ()
    %cst_23 = arith.constant dense<0xFF800000> : vector<2x8xf32>
    %89 = vector.multi_reduction <maximumf>, %88, %cst_23 [2] : vector<2x8x8xf32> to vector<2x8xf32>
    %90 = vector.shape_cast %89 : vector<2x8xf32> to vector<2x8x1xf32>
    %91 = vector.broadcast %90 : vector<2x8x1xf32> to vector<2x8x8xf32>
    %92 = arith.subf %88, %91 : vector<2x8x8xf32>
    %93 = math.exp %92 : vector<2x8x8xf32>
    %cst_24 = arith.constant dense<0.000000e+00> : vector<2x8xf32>
    %94 = vector.multi_reduction <add>, %93, %cst_24 [2] : vector<2x8x8xf32> to vector<2x8xf32>
    %95 = vector.shape_cast %94 : vector<2x8xf32> to vector<2x8x1xf32>
    %96 = tpu.reciprocal %95 {approx = true} : vector<2x8x1xf32> -> vector<2x8x1xf32>
    %97 = vector.broadcast %96 : vector<2x8x1xf32> to vector<2x8x8xf32>
    %98 = arith.mulf %93, %97 : vector<2x8x8xf32>
    %99 = arith.truncf %98 : vector<2x8x8xf32> to vector<2x8x8xbf16>
    "tpu.trace_start"() <{level = 10 : i32, message = "bqk,bkd->bqd"}> : () -> ()
    %cst_25 = arith.constant dense<0.000000e+00> : vector<2x8x32xf32>
    %100 = tpu.matmul %99, %87, %cst_25 {dimension_numbers = #tpu.dot_dimension_numbers<[2], [1], [1], [2], [0, 0, 0, 1, 1, 2], [0], [0]>} : vector<2x8x8xbf16>, vector<2x8x32xbf16>, vector<2x8x32xf32> -> vector<2x8x32xf32>
    "tpu.trace_stop"() : () -> ()
    %101 = vector.shape_cast %100 : vector<2x8x32xf32> to vector<16x32xf32>
    %102 = arith.truncf %101 : vector<16x32xf32> to vector<16x32xbf16>
    %103 = vector.extract_strided_slice %32 {offsets = [64, 0], sizes = [32, 128], strides = [1, 1]} : vector<128x128xbf16> to vector<32x128xbf16>
    %cst_26 = arith.constant dense<0.000000e+00> : vector<16x128xf32>
    %104 = tpu.matmul %102, %103, %cst_26 {dimension_numbers = #tpu.dot_dimension_numbers<[1], [0], [0], [1], [0, 0, 1, 1], [], []>} : vector<16x32xbf16>, vector<32x128xbf16>, vector<16x128xf32> -> vector<16x128xf32>
    %105 = arith.addf %81, %104 : vector<16x128xf32>
    %106 = vector.extract_strided_slice %22 {offsets = [0, 0, 96], sizes = [2, 8, 32], strides = [1, 1, 1]} : vector<2x8x128xf32> to vector<2x8x32xf32>
    %107 = arith.truncf %106 : vector<2x8x32xf32> to vector<2x8x32xbf16>
    %108 = vector.extract_strided_slice %26 {offsets = [0, 0, 96], sizes = [2, 8, 32], strides = [1, 1, 1]} : vector<2x8x128xf32> to vector<2x8x32xf32>
    %109 = arith.truncf %108 : vector<2x8x32xf32> to vector<2x8x32xbf16>
    %110 = vector.extract_strided_slice %30 {offsets = [0, 0, 96], sizes = [2, 8, 32], strides = [1, 1, 1]} : vector<2x8x128xf32> to vector<2x8x32xf32>
    %111 = arith.truncf %110 : vector<2x8x32xf32> to vector<2x8x32xbf16>
    "tpu.trace_start"() <{level = 10 : i32, message = "bqd,bkd->bqk"}> : () -> ()
    %cst_27 = arith.constant dense<0.000000e+00> : vector<2x8x8xf32>
    %112 = tpu.matmul %107, %109, %cst_27 {dimension_numbers = #tpu.dot_dimension_numbers<[2], [2], [1], [1], [0, 0, 0, 1, 1, 1], [0], [0]>} : vector<2x8x32xbf16>, vector<2x8x32xbf16>, vector<2x8x8xf32> -> vector<2x8x8xf32>
    "tpu.trace_stop"() : () -> ()
    %cst_28 = arith.constant dense<0xFF800000> : vector<2x8xf32>
    %113 = vector.multi_reduction <maximumf>, %112, %cst_28 [2] : vector<2x8x8xf32> to vector<2x8xf32>
    %114 = vector.shape_cast %113 : vector<2x8xf32> to vector<2x8x1xf32>
    %115 = vector.broadcast %114 : vector<2x8x1xf32> to vector<2x8x8xf32>
    %116 = arith.subf %112, %115 : vector<2x8x8xf32>
    %117 = math.exp %116 : vector<2x8x8xf32>
    %cst_29 = arith.constant dense<0.000000e+00> : vector<2x8xf32>
    %118 = vector.multi_reduction <add>, %117, %cst_29 [2] : vector<2x8x8xf32> to vector<2x8xf32>
    %119 = vector.shape_cast %118 : vector<2x8xf32> to vector<2x8x1xf32>
    %120 = tpu.reciprocal %119 {approx = true} : vector<2x8x1xf32> -> vector<2x8x1xf32>
    %121 = vector.broadcast %120 : vector<2x8x1xf32> to vector<2x8x8xf32>
    %122 = arith.mulf %117, %121 : vector<2x8x8xf32>
    %123 = arith.truncf %122 : vector<2x8x8xf32> to vector<2x8x8xbf16>
    "tpu.trace_start"() <{level = 10 : i32, message = "bqk,bkd->bqd"}> : () -> ()
    %cst_30 = arith.constant dense<0.000000e+00> : vector<2x8x32xf32>
    %124 = tpu.matmul %123, %111, %cst_30 {dimension_numbers = #tpu.dot_dimension_numbers<[2], [1], [1], [2], [0, 0, 0, 1, 1, 2], [0], [0]>} : vector<2x8x8xbf16>, vector<2x8x32xbf16>, vector<2x8x32xf32> -> vector<2x8x32xf32>
    "tpu.trace_stop"() : () -> ()
    %125 = vector.shape_cast %124 : vector<2x8x32xf32> to vector<16x32xf32>
    %126 = arith.truncf %125 : vector<16x32xf32> to vector<16x32xbf16>
    %127 = vector.extract_strided_slice %32 {offsets = [96, 0], sizes = [32, 128], strides = [1, 1]} : vector<128x128xbf16> to vector<32x128xbf16>
    %cst_31 = arith.constant dense<0.000000e+00> : vector<16x128xf32>
    %128 = tpu.matmul %126, %127, %cst_31 {dimension_numbers = #tpu.dot_dimension_numbers<[1], [0], [0], [1], [0, 0, 1, 1], [], []>} : vector<16x32xbf16>, vector<32x128xbf16>, vector<16x128xf32> -> vector<16x128xf32>
    %129 = arith.addf %105, %128 : vector<16x128xf32>
    %130 = arith.addf %3, %129 : vector<16x128xf32>
    %131 = vector.broadcast %9 : vector<1x128xf32> to vector<16x128xf32>
    %132 = arith.addf %130, %131 : vector<16x128xf32>
    %cst_32 = arith.constant dense<0.000000e+00> : vector<16xf32>
    %133 = vector.multi_reduction <add>, %132, %cst_32 [1] : vector<16x128xf32> to vector<16xf32>
    %134 = vector.shape_cast %133 : vector<16xf32> to vector<16x1xf32>
    %cst_33 = arith.constant 1.280000e+02 : f32
    %135 = vector.broadcast %cst_33 : f32 to vector<16x1xf32>
    %136 = arith.divf %134, %135 : vector<16x1xf32>
    %137 = vector.broadcast %136 : vector<16x1xf32> to vector<16x128xf32>
    %138 = arith.subf %132, %137 : vector<16x128xf32>
    %139 = arith.mulf %138, %138 : vector<16x128xf32>
    %cst_34 = arith.constant dense<0.000000e+00> : vector<16xf32>
    %140 = vector.multi_reduction <add>, %139, %cst_34 [1] : vector<16x128xf32> to vector<16xf32>
    %141 = vector.shape_cast %140 : vector<16xf32> to vector<16x1xf32>
    %cst_35 = arith.constant 1.280000e+02 : f32
    %142 = vector.broadcast %cst_35 : f32 to vector<16x1xf32>
    %143 = arith.divf %141, %142 : vector<16x1xf32>
    %144 = vector.broadcast %136 : vector<16x1xf32> to vector<16x128xf32>
    %145 = arith.subf %132, %144 : vector<16x128xf32>
    %cst_36 = arith.constant 9.99999996E-13 : f32
    %146 = vector.broadcast %cst_36 : f32 to vector<16x1xf32>
    %147 = arith.addf %143, %146 : vector<16x1xf32>
    %148 = math.rsqrt %147 : vector<16x1xf32>
    %149 = vector.broadcast %148 : vector<16x1xf32> to vector<16x128xf32>
    %150 = arith.mulf %145, %149 : vector<16x128xf32>
    %151 = vector.broadcast %10 : vector<1x128xf32> to vector<16x128xf32>
    %152 = arith.mulf %150, %151 : vector<16x128xf32>
    %153 = vector.broadcast %11 : vector<1x128xf32> to vector<16x128xf32>
    %154 = arith.addf %152, %153 : vector<16x128xf32>
    %155 = arith.truncf %154 : vector<16x128xf32> to vector<16x128xbf16>
    %c0_37 = arith.constant 0 : index
    %c0_38 = arith.constant 0 : index
    %c0_39 = arith.constant 0 : index
    %156 = vector.load %arg7[%c0_37, %c0_38, %c0_39] : memref<1x128x256xbf16, #tpu.memory_space<vmem>>, vector<1x128x256xbf16>
    %157 = vector.shape_cast %156 : vector<1x128x256xbf16> to vector<128x256xbf16>
    %cst_40 = arith.constant dense<0.000000e+00> : vector<16x256xf32>
    %158 = tpu.matmul %155, %157, %cst_40 {dimension_numbers = #tpu.dot_dimension_numbers<[1], [0], [0], [1], [0, 0, 1, 1], [], []>} : vector<16x128xbf16>, vector<128x256xbf16>, vector<16x256xf32> -> vector<16x256xf32>
    %c0_41 = arith.constant 0 : index
    %c0_42 = arith.constant 0 : index
    %c0_43 = arith.constant 0 : index
    %159 = vector.load %arg10[%c0_41, %c0_42, %c0_43] : memref<1x1x256xf32, #tpu.memory_space<vmem>>, vector<1x1x256xf32>
    %160 = vector.shape_cast %159 : vector<1x1x256xf32> to vector<1x256xf32>
    %161 = vector.broadcast %160 : vector<1x256xf32> to vector<16x256xf32>
    %162 = arith.addf %158, %161 : vector<16x256xf32>
    %163 = arith.mulf %162, %162 : vector<16x256xf32>
    %164 = arith.mulf %162, %163 : vector<16x256xf32>
    %cst_44 = arith.constant 4.471500e-02 : f32
    %165 = vector.broadcast %cst_44 : f32 to vector<16x256xf32>
    %166 = arith.mulf %165, %164 : vector<16x256xf32>
    %167 = arith.addf %162, %166 : vector<16x256xf32>
    %cst_45 = arith.constant 0.797884583 : f32
    %168 = vector.broadcast %cst_45 : f32 to vector<16x256xf32>
    %169 = arith.mulf %168, %167 : vector<16x256xf32>
    %170 = math.tanh %169 : vector<16x256xf32>
    %cst_46 = arith.constant 1.000000e+00 : f32
    %171 = vector.broadcast %cst_46 : f32 to vector<16x256xf32>
    %172 = arith.addf %171, %170 : vector<16x256xf32>
    %cst_47 = arith.constant 5.000000e-01 : f32
    %173 = vector.broadcast %cst_47 : f32 to vector<16x256xf32>
    %174 = arith.mulf %173, %172 : vector<16x256xf32>
    %175 = arith.mulf %162, %174 : vector<16x256xf32>
    %176 = arith.truncf %175 : vector<16x256xf32> to vector<16x256xbf16>
    %c0_48 = arith.constant 0 : index
    %c0_49 = arith.constant 0 : index
    %c0_50 = arith.constant 0 : index
    %177 = vector.load %arg8[%c0_48, %c0_49, %c0_50] : memref<1x256x128xbf16, #tpu.memory_space<vmem>>, vector<1x256x128xbf16>
    %178 = vector.shape_cast %177 : vector<1x256x128xbf16> to vector<256x128xbf16>
    %cst_51 = arith.constant dense<0.000000e+00> : vector<16x128xf32>
    %179 = tpu.matmul %176, %178, %cst_51 {dimension_numbers = #tpu.dot_dimension_numbers<[1], [0], [0], [1], [0, 0, 1, 1], [], []>} : vector<16x256xbf16>, vector<256x128xbf16>, vector<16x128xf32> -> vector<16x128xf32>
    %180 = arith.addf %154, %179 : vector<16x128xf32>
    %181 = vector.broadcast %12 : vector<1x128xf32> to vector<16x128xf32>
    %182 = arith.addf %180, %181 : vector<16x128xf32>
    %cst_52 = arith.constant dense<0.000000e+00> : vector<16xf32>
    %183 = vector.multi_reduction <add>, %182, %cst_52 [1] : vector<16x128xf32> to vector<16xf32>
    %184 = vector.shape_cast %183 : vector<16xf32> to vector<16x1xf32>
    %cst_53 = arith.constant 1.280000e+02 : f32
    %185 = vector.broadcast %cst_53 : f32 to vector<16x1xf32>
    %186 = arith.divf %184, %185 : vector<16x1xf32>
    %187 = vector.broadcast %186 : vector<16x1xf32> to vector<16x128xf32>
    %188 = arith.subf %182, %187 : vector<16x128xf32>
    %189 = arith.mulf %188, %188 : vector<16x128xf32>
    %cst_54 = arith.constant dense<0.000000e+00> : vector<16xf32>
    %190 = vector.multi_reduction <add>, %189, %cst_54 [1] : vector<16x128xf32> to vector<16xf32>
    %191 = vector.shape_cast %190 : vector<16xf32> to vector<16x1xf32>
    %cst_55 = arith.constant 1.280000e+02 : f32
    %192 = vector.broadcast %cst_55 : f32 to vector<16x1xf32>
    %193 = arith.divf %191, %192 : vector<16x1xf32>
    %194 = vector.broadcast %186 : vector<16x1xf32> to vector<16x128xf32>
    %195 = arith.subf %182, %194 : vector<16x128xf32>
    %cst_56 = arith.constant 9.99999996E-13 : f32
    %196 = vector.broadcast %cst_56 : f32 to vector<16x1xf32>
    %197 = arith.addf %193, %196 : vector<16x1xf32>
    %198 = math.rsqrt %197 : vector<16x1xf32>
    %199 = vector.broadcast %198 : vector<16x1xf32> to vector<16x128xf32>
    %200 = arith.mulf %195, %199 : vector<16x128xf32>
    %201 = vector.broadcast %13 : vector<1x128xf32> to vector<16x128xf32>
    %202 = arith.mulf %200, %201 : vector<16x128xf32>
    %203 = vector.broadcast %14 : vector<1x128xf32> to vector<16x128xf32>
    %204 = arith.addf %202, %203 : vector<16x128xf32>
    %c0_57 = arith.constant 0 : index
    %c0_58 = arith.constant 0 : index
    %205 = vector.load %arg12[%c0_57, %c0_58] : memref<16x128xf32, #tpu.memory_space<vmem>>, vector<16x128xf32>
    tpu.vector_store %arg12[%c0_57, %c0_58], %204 {strides = array<i32>} : memref<16x128xf32, #tpu.memory_space<vmem>>, vector<16x128xf32>,
    %c1_i32 = arith.constant 1 : i32
    %206 = arith.cmpi eq, %arg1, %c1_i32 : i32
    %207 = arith.extui %206 : i1 to i32
    %c0_i32_59 = arith.constant 0 : i32
    %208 = arith.cmpi ne, %207, %c0_i32_59 : i32
    scf.if %208 {
      %209 = vector.shape_cast %204 : vector<16x128xf32> to vector<2x8x128xf32>
      %210 = arith.truncf %209 : vector<2x8x128xf32> to vector<2x8x128xbf16>
      %c0_60 = arith.constant 0 : index
      %c0_61 = arith.constant 0 : index
      %c0_62 = arith.constant 0 : index
      %211 = vector.load %arg11[%c0_60, %c0_61, %c0_62] : memref<2x8x128xbf16, #tpu.memory_space<vmem>>, vector<2x8x128xbf16>
      tpu.vector_store %arg11[%c0_60, %c0_61, %c0_62], %210 {strides = array<i32>} : memref<2x8x128xbf16, #tpu.memory_space<vmem>>, vector<2x8x128xbf16>,
    } else {
    }
    return
  }
  func.func @transform_0(%arg0: i32, %arg1: i32) -> (i32, i32, i32) {
    %c0_i32 = arith.constant 0 : i32
    %c0_i32_0 = arith.constant 0 : i32
    %c0_i32_1 = arith.constant 0 : i32
    return %arg0, %c0_i32, %c0_i32_0 : i32, i32, i32
  }
  func.func @transform_1(%arg0: i32, %arg1: i32) -> (i32, i32) {
    %c0_i32 = arith.constant 0 : i32
    %c0_i32_0 = arith.constant 0 : i32
    %c0_i32_1 = arith.constant 0 : i32
    return %c0_i32, %c0_i32_0 : i32, i32
  }
  func.func @transform_2(%arg0: i32, %arg1: i32) -> (i32, i32) {
    %c0_i32 = arith.constant 0 : i32
    %c0_i32_0 = arith.constant 0 : i32
    %c0_i32_1 = arith.constant 0 : i32
    return %c0_i32, %c0_i32_0 : i32, i32
  }
  func.func @transform_3(%arg0: i32, %arg1: i32) -> (i32, i32, i32) {
    %c0_i32 = arith.constant 0 : i32
    %c0_i32_0 = arith.constant 0 : i32
    %c0_i32_1 = arith.constant 0 : i32
    return %arg1, %c0_i32, %c0_i32_0 : i32, i32, i32
  }
  func.func @transform_4(%arg0: i32, %arg1: i32) -> (i32, i32, i32) {
    %c0_i32 = arith.constant 0 : i32
    %c0_i32_0 = arith.constant 0 : i32
    %c0_i32_1 = arith.constant 0 : i32
    return %arg1, %c0_i32, %c0_i32_0 : i32, i32, i32
  }
  func.func @transform_5(%arg0: i32, %arg1: i32) -> (i32, i32, i32) {
    %c0_i32 = arith.constant 0 : i32
    %c0_i32_0 = arith.constant 0 : i32
    %c0_i32_1 = arith.constant 0 : i32
    return %arg1, %c0_i32, %c0_i32_0 : i32, i32, i32
  }
  func.func @transform_6(%arg0: i32, %arg1: i32) -> (i32, i32, i32) {
    %c0_i32 = arith.constant 0 : i32
    %c0_i32_0 = arith.constant 0 : i32
    %c0_i32_1 = arith.constant 0 : i32
    return %arg1, %c0_i32, %c0_i32_0 : i32, i32, i32
  }
  func.func @transform_7(%arg0: i32, %arg1: i32) -> (i32, i32, i32) {
    %c0_i32 = arith.constant 0 : i32
    %c0_i32_0 = arith.constant 0 : i32
    %c0_i32_1 = arith.constant 0 : i32
    return %arg1, %c0_i32, %c0_i32_0 : i32, i32, i32
  }
  func.func @transform_8(%arg0: i32, %arg1: i32) -> (i32, i32, i32) {
    %c0_i32 = arith.constant 0 : i32
    %c0_i32_0 = arith.constant 0 : i32
    %c0_i32_1 = arith.constant 0 : i32
    return %arg1, %c0_i32, %c0_i32_0 : i32, i32, i32
  }
  func.func @transform_9(%arg0: i32, %arg1: i32) -> (i32, i32, i32) {
    %c0_i32 = arith.constant 0 : i32
    %c0_i32_0 = arith.constant 0 : i32
    %c0_i32_1 = arith.constant 0 : i32
    return %arg0, %c0_i32, %c0_i32_0 : i32, i32, i32
  }
}

</mosaic_0001>

<llo_original>
// kernel: sql_encoder_forward.1
$region0: #{sql_encoder_forward.1}
  #allocation0 [shape = 'u32[]', space=smem, size = 0x4, offset = 0x4, fixed_abs, tag = 'smem constant byte address 0x4 - core index']
  #allocation1 [shape = 'u32[144,128]{1,0:T(1,128)}', space=vmem, size = 0x12000, scoped, tag = 'internal scratch']
  #allocation2 [shape = 'f32[16,128]{1,0:T(8,128)}', space=vmem, size = 0x2000, scoped, tag = 'scratch operand']
  %s0 = inlined_call_operand.vmem [shape: bf16[4,8,128], index: 0, kind: input, shape index: {}]
  %s1 = inlined_call_operand.vmem [shape: f32[1,128], index: 1, kind: input, shape index: {}]
  %s2 = inlined_call_operand.vmem [shape: f32[1,128], index: 2, kind: input, shape index: {}]
  %s3 = inlined_call_operand.vmem [shape: bf16[2,128,384], index: 3, kind: input, shape index: {}]
  %s4 = inlined_call_operand.hbm [shape: bf16[2,128,128], index: 4, kind: input, shape index: {}]
  %s5 = inlined_call_operand.hbm [shape: bf16[2,128,256], index: 5, kind: input, shape index: {}]
  %s6 = inlined_call_operand.hbm [shape: bf16[2,256,128], index: 6, kind: input, shape index: {}]
  %s7 = inlined_call_operand.vmem [shape: f32[2,16,128], index: 7, kind: input, shape index: {}]
  %s8 = inlined_call_operand.vmem [shape: f32[2,1,256], index: 8, kind: input, shape index: {}]
  %s9 = inlined_call_operand.hbm [shape: bf16[4,8,128], index: 9, kind: output, shape index: {}]
  %s10 = sld [smem:[#allocation0]]
  $region89: #{sql_encoder_forward.1} parent=0
    _
  %s12 = ssub.s32 1, %s10
  %s13 = scalar_select 0, %s12, %s10
  $region1: #{sql_encoder_forward.1} parent=0
    #allocation3 [shape = 'u8[65536]{0}', space=vmem, size = 0x10000, scoped, tag = 'input window, operand 4']
    #allocation4 [shape = 's32[2]{0}', space=sflag, size = 0x8, scoped, tag = 'scoped memory for sql_encoder_forward.1']
    #allocation5 [shape = 's32[2]{0}', space=sflag, size = 0x8, scoped, tag = 'scoped memory for sql_encoder_forward.1']
    #allocation6 [shape = 'u8[131072]{0}', space=vmem, size = 0x20000, scoped, tag = 'input window, operand 5']
    #allocation7 [shape = 's32[2]{0}', space=sflag, size = 0x8, scoped, tag = 'scoped memory for sql_encoder_forward.1']
    #allocation8 [shape = 'u8[131072]{0}', space=vmem, size = 0x20000, scoped, tag = 'input window, operand 6']
    #allocation9 [shape = 'u8[8192]{0}', space=vmem, size = 0x2000, scoped, tag = 'output window, operand 0']
    %14 = vsyncpa [#allocation4], 0
    %s15 = scalar_lea.sflag [#allocation4], 1
    %16 = vsyncpa %s15, 0
    %17 = vsyncpa [#allocation7], 0
    %s18 = scalar_lea.sflag [#allocation7], 1
    %19 = vsyncpa %s18, 0
    %20 = vsyncpa [#allocation5], 0
    %s21 = scalar_lea.sflag [#allocation5], 1
    %22 = vsyncpa %s21, 0
    loop: start=0, step=1, limit=6
    $region2: #{sql_encoder_forward.1} parent=1 // loop_pre_header
      _
    $region3: #{sql_encoder_forward.1} parent=1 // loop_header
      %s24 = sphi 0, %s28
      %p25 = scmp.ge.s32.totalorder %s24, 6
      %s31 = sphi 0, %s43
      %s32 = sphi 0, %s39
      %s33 = sphi 0, %s31
      %s34 = sphi 0, %s32
      %s35 = sphi 0, %s33
      %s36 = sphi 0, %s34
      %s46 = sphi 0, %s48
      %s49 = sphi 0, %s46
      %s50 = sphi 0, %s49
      %s66 = sphi 0, %s50
      %s70 = sphi 0, %s70
      %s72 = sphi 0, %s70
      %s73 = sphi 0, %s72
      %s87 = sphi 0, %s73
      %s91 = sphi 0, %s91
      %s93 = sphi 0, %s91
      %s94 = sphi 0, %s93
      %s108 = sphi 0, %s94
      %s114 = sphi 0, %s116
      %s117 = sphi 0, %s114
      %s118 = sphi 0, %s117
      %s134 = sphi 0, %s118
      %s140 = sphi 0, %s142
      %s143 = sphi 0, %s140
      %s144 = sphi 0, %s143
      %s160 = sphi 0, %s144
      %s166 = sphi 0, %s168
      %s169 = sphi 0, %s166
      %s170 = sphi 0, %s169
      %s186 = sphi 0, %s170
      %s192 = sphi 0, %s194
      %s195 = sphi 0, %s192
      %s196 = sphi 0, %s195
      %s212 = sphi 0, %s196
      %s218 = sphi 0, %s220
      %s221 = sphi 0, %s218
      %s222 = sphi 0, %s221
      %s238 = sphi 0, %s222
      %s244 = sphi 0, %s246
      %s247 = sphi 0, %s244
      %s248 = sphi 0, %s247
      %s264 = sphi 0, %s248
      %s270 = sphi 0, %s272
      %s273 = sphi 0, %s270
      %s274 = sphi 0, %s273
      %s290 = sphi 0, %s274
    $region4: #{sql_encoder_forward.1} parent=1 // loop_header_branch
      %27 = sbr.rel (%p25) target = $region8
    $region5: #{sql_encoder_forward.1} parent=1 // loop_body
      %s29 = ssub.s32 %s24, 1
      %s30 = ssub.s32 %s24, 2
      %s37 = sadd.s32 1, %s32
      %p38 = scmp.ge.s32.totalorder %s37, 2
      %s39 = scalar_select %p38, 0, %s37
      %s40 = sadd.s32 1, %s31
      %s41 = scalar_select %p38, %s40, %s31
      %p42 = scmp.ge.s32.totalorder %s41, 2
      %s43 = scalar_select %p42, 0, %s41
      %s44 = ssub.s32 %s31, %s43
      %p45 = scmp.eq.s32.totalorder %s44, 0
      %s47 = sadd.s32 %s46, 1
      %s48 = scalar_select %p45, %s46, %s47
      %p51 = pneg %p45
      %p52 = scmp.eq.s32.totalorder %s24, 3
      %p53 = por %p51, %p52
      %p54 = scmp.ne.s32.totalorder %s46, %s49
      %p55 = scmp.eq.s32.totalorder %s24, 0
      %p56 = por %p54, %p55
      %p57 = scmp.ne.s32.totalorder %s46, %s49
      %p58 = scmp.eq.s32.totalorder %s29, 3
      %p59 = por %p57, %p58
      %p60 = scmp.ne.s32.totalorder %s49, %s50
      %p61 = scmp.eq.s32.totalorder %s29, 0
      %p62 = por %p60, %p61
      %p63 = scmp.ne.s32.totalorder %s49, %s50
      %p64 = scmp.eq.s32.totalorder %s30, 3
      %p65 = por %p63, %p64
      %p67 = scmp.ne.s32.totalorder %s50, %s66
      %p68 = scmp.eq.s32.totalorder %s30, 0
      %p69 = por %p67, %p68
      %s71 = sadd.s32 %s70, 1
      %p74 = scmp.eq.s32.totalorder %s24, 3
      %p75 = scmp.ne.s32.totalorder %s70, %s72
      %p76 = scmp.eq.s32.totalorder %s24, 0
      %p77 = por %p75, %p76
      %p78 = scmp.ne.s32.totalorder %s70, %s72
      %p79 = scmp.eq.s32.totalorder %s29, 3
      %p80 = por %p78, %p79
      %p81 = scmp.ne.s32.totalorder %s72, %s73
      %p82 = scmp.eq.s32.totalorder %s29, 0
      %p83 = por %p81, %p82
      %p84 = scmp.ne.s32.totalorder %s72, %s73
      %p85 = scmp.eq.s32.totalorder %s30, 3
      %p86 = por %p84, %p85
      %p88 = scmp.ne.s32.totalorder %s73, %s87
      %p89 = scmp.eq.s32.totalorder %s30, 0
      %p90 = por %p88, %p89
      %s92 = sadd.s32 %s91, 1
      %p95 = scmp.eq.s32.totalorder %s24, 3
      %p96 = scmp.ne.s32.totalorder %s91, %s93
      %p97 = scmp.eq.s32.totalorder %s24, 0
      %p98 = por %p96, %p97
      %p99 = scmp.ne.s32.totalorder %s91, %s93
      %p100 = scmp.eq.s32.totalorder %s29, 3
      %p101 = por %p99, %p100
      %p102 = scmp.ne.s32.totalorder %s93, %s94
      %p103 = scmp.eq.s32.totalorder %s29, 0
      %p104 = por %p102, %p103
      %p105 = scmp.ne.s32.totalorder %s93, %s94
      %p106 = scmp.eq.s32.totalorder %s30, 3
      %p107 = por %p105, %p106
      %p109 = scmp.ne.s32.totalorder %s94, %s108
      %p110 = scmp.eq.s32.totalorder %s30, 0
      %p111 = por %p109, %p110
      %s112 = ssub.s32 %s32, %s39
      %p113 = scmp.eq.s32.totalorder %s112, 0
      %s115 = sadd.s32 %s114, 1
      %s116 = scalar_select %p113, %s114, %s115
      %p119 = pneg %p113
      %p120 = scmp.eq.s32.totalorder %s24, 3
      %p121 = por %p119, %p120
      %p122 = scmp.ne.s32.totalorder %s114, %s117
      %p123 = scmp.eq.s32.totalorder %s24, 0
      %p124 = por %p122, %p123
      %p125 = scmp.ne.s32.totalorder %s114, %s117
      %p126 = scmp.eq.s32.totalorder %s29, 3
      %p127 = por %p125, %p126
      %p128 = scmp.ne.s32.totalorder %s117, %s118
      %p129 = scmp.eq.s32.totalorder %s29, 0
      %p130 = por %p128, %p129
      %p131 = scmp.ne.s32.totalorder %s117, %s118
      %p132 = scmp.eq.s32.totalorder %s30, 3
      %p133 = por %p131, %p132
      %p135 = scmp.ne.s32.totalorder %s118, %s134
      %p136 = scmp.eq.s32.totalorder %s30, 0
      %p137 = por %p135, %p136
      %s138 = ssub.s32 %s32, %s39
      %p139 = scmp.eq.s32.totalorder %s138, 0
      %s141 = sadd.s32 %s140, 1
      %s142 = scalar_select %p139, %s140, %s141
      %p145 = pneg %p139
      %p146 = scmp.eq.s32.totalorder %s24, 3
      %p147 = por %p145, %p146
      %p148 = scmp.ne.s32.totalorder %s140, %s143
      %p149 = scmp.eq.s32.totalorder %s24, 0
      %p150 = por %p148, %p149
      %p151 = scmp.ne.s32.totalorder %s140, %s143
      %p152 = scmp.eq.s32.totalorder %s29, 3
      %p153 = por %p151, %p152
      %p154 = scmp.ne.s32.totalorder %s143, %s144
      %p155 = scmp.eq.s32.totalorder %s29, 0
      %p156 = por %p154, %p155
      %p157 = scmp.ne.s32.totalorder %s143, %s144
      %p158 = scmp.eq.s32.totalorder %s30, 3
      %p159 = por %p157, %p158
      %p161 = scmp.ne.s32.totalorder %s144, %s160
      %p162 = scmp.eq.s32.totalorder %s30, 0
      %p163 = por %p161, %p162
      %s164 = ssub.s32 %s32, %s39
      %p165 = scmp.eq.s32.totalorder %s164, 0
      %s167 = sadd.s32 %s166, 1
      %s168 = scalar_select %p165, %s166, %s167
      %p171 = pneg %p165
      %p172 = scmp.eq.s32.totalorder %s24, 3
      %p173 = por %p171, %p172
      %p174 = scmp.ne.s32.totalorder %s166, %s169
      %p175 = scmp.eq.s32.totalorder %s24, 0
      %p176 = por %p174, %p175
      %p177 = scmp.ne.s32.totalorder %s166, %s169
      %p178 = scmp.eq.s32.totalorder %s29, 3
      %p179 = por %p177, %p178
      %p180 = scmp.ne.s32.totalorder %s169, %s170
      %p181 = scmp.eq.s32.totalorder %s29, 0
      %p182 = por %p180, %p181
      %p183 = scmp.ne.s32.totalorder %s169, %s170
      %p184 = scmp.eq.s32.totalorder %s30, 3
      %p185 = por %p183, %p184
      %p187 = scmp.ne.s32.totalorder %s170, %s186
      %p188 = scmp.eq.s32.totalorder %s30, 0
      %p189 = por %p187, %p188
      %s190 = ssub.s32 %s32, %s39
      %p191 = scmp.eq.s32.totalorder %s190, 0
      %s193 = sadd.s32 %s192, 1
      %s194 = scalar_select %p191, %s192, %s193
      %p197 = pneg %p191
      %p198 = scmp.eq.s32.totalorder %s24, 3
      %p199 = por %p197, %p198
      %p200 = scmp.ne.s32.totalorder %s192, %s195
      %p201 = scmp.eq.s32.totalorder %s24, 0
      %p202 = por %p200, %p201
      %p203 = scmp.ne.s32.totalorder %s192, %s195
      %p204 = scmp.eq.s32.totalorder %s29, 3
      %p205 = por %p203, %p204
      %p206 = scmp.ne.s32.totalorder %s195, %s196
      %p207 = scmp.eq.s32.totalorder %s29, 0
      %p208 = por %p206, %p207
      %p209 = scmp.ne.s32.totalorder %s195, %s196
      %p210 = scmp.eq.s32.totalorder %s30, 3
      %p211 = por %p209, %p210
      %p213 = scmp.ne.s32.totalorder %s196, %s212
      %p214 = scmp.eq.s32.totalorder %s30, 0
      %p215 = por %p213, %p214
      %s216 = ssub.s32 %s32, %s39
      %p217 = scmp.eq.s32.totalorder %s216, 0
      %s219 = sadd.s32 %s218, 1
      %s220 = scalar_select %p217, %s218, %s219
      %p223 = pneg %p217
      %p224 = scmp.eq.s32.totalorder %s24, 3
      %p225 = por %p223, %p224
      %p226 = scmp.ne.s32.totalorder %s218, %s221
      %p227 = scmp.eq.s32.totalorder %s24, 0
      %p228 = por %p226, %p227
      %p229 = scmp.ne.s32.totalorder %s218, %s221
      %p230 = scmp.eq.s32.totalorder %s29, 3
      %p231 = por %p229, %p230
      %p232 = scmp.ne.s32.totalorder %s221, %s222
      %p233 = scmp.eq.s32.totalorder %s29, 0
      %p234 = por %p232, %p233
      %p235 = scmp.ne.s32.totalorder %s221, %s222
      %p236 = scmp.eq.s32.totalorder %s30, 3
      %p237 = por %p235, %p236
      %p239 = scmp.ne.s32.totalorder %s222, %s238
      %p240 = scmp.eq.s32.totalorder %s30, 0
      %p241 = por %p239, %p240
      %s242 = ssub.s32 %s32, %s39
      %p243 = scmp.eq.s32.totalorder %s242, 0
      %s245 = sadd.s32 %s244, 1
      %s246 = scalar_select %p243, %s244, %s245
      %p249 = pneg %p243
      %p250 = scmp.eq.s32.totalorder %s24, 3
      %p251 = por %p249, %p250
      %p252 = scmp.ne.s32.totalorder %s244, %s247
      %p253 = scmp.eq.s32.totalorder %s24, 0
      %p254 = por %p252, %p253
      %p255 = scmp.ne.s32.totalorder %s244, %s247
      %p256 = scmp.eq.s32.totalorder %s29, 3
      %p257 = por %p255, %p256
      %p258 = scmp.ne.s32.totalorder %s247, %s248
      %p259 = scmp.eq.s32.totalorder %s29, 0
      %p260 = por %p258, %p259
      %p261 = scmp.ne.s32.totalorder %s247, %s248
      %p262 = scmp.eq.s32.totalorder %s30, 3
      %p263 = por %p261, %p262
      %p265 = scmp.ne.s32.totalorder %s248, %s264
      %p266 = scmp.eq.s32.totalorder %s30, 0
      %p267 = por %p265, %p266
      %s268 = ssub.s32 %s31, %s43
      %p269 = scmp.eq.s32.totalorder %s268, 0
      %s271 = sadd.s32 %s270, 1
      %s272 = scalar_select %p269, %s270, %s271
      %p275 = pneg %p269
      %p276 = scmp.eq.s32.totalorder %s24, 3
      %p277 = por %p275, %p276
      %p278 = scmp.ne.s32.totalorder %s270, %s273
      %p279 = scmp.eq.s32.totalorder %s24, 0
      %p280 = por %p278, %p279
      %p281 = scmp.ne.s32.totalorder %s270, %s273
      %p282 = scmp.eq.s32.totalorder %s29, 3
      %p283 = por %p281, %p282
      %p284 = scmp.ne.s32.totalorder %s273, %s274
      %p285 = scmp.eq.s32.totalorder %s29, 0
      %p286 = por %p284, %p285
      %p287 = scmp.ne.s32.totalorder %s273, %s274
      %p288 = scmp.eq.s32.totalorder %s30, 3
      %p289 = por %p287, %p288
      %p291 = scmp.ne.s32.totalorder %s274, %s290
      %p292 = scmp.eq.s32.totalorder %s30, 0
      %p293 = por %p291, %p292
      %p294 = scmp.le.s32.totalorder 1, %s24
      %p295 = scmp.lt.s32.totalorder %s24, 5
      %p296 = pnand %p294, %p295
      %p297 = pneg %p296
      // Predicated region
      $region9: #{sql_encoder_forward.1} parent=5 // pred_check
        _
      $region10: #{sql_encoder_forward.1} parent=5 // pred_check_branch
        %299 = sbr.rel (%p296) target = $region12
      $region11: #{sql_encoder_forward.1} parent=5 // pred_region
        %s300 = ssub.s32 %s24, 1
        // Predicated region
        $region13: #{sql_encoder_forward.1} parent=11 // pred_check
          %p301 = pneg %p83
        $region14: #{sql_encoder_forward.1} parent=11 // pred_check_branch
          %303 = sbr.rel (%p301) target = $region16
        $region15: #{sql_encoder_forward.1} parent=11 // pred_region
          _
        $region16: #{sql_encoder_forward.1} parent=11 // pred_fallthru
          _
        // Predicated region
        $region17: #{sql_encoder_forward.1} parent=11 // pred_check
          %p304 = pneg %p104
        $region18: #{sql_encoder_forward.1} parent=11 // pred_check_branch
          %306 = sbr.rel (%p304) target = $region20
        $region19: #{sql_encoder_forward.1} parent=11 // pred_region
          _
        $region20: #{sql_encoder_forward.1} parent=11 // pred_fallthru
          _
      $region12: #{sql_encoder_forward.1} parent=5 // pred_fallthru
        _
      %p307 = scmp.lt.s32.totalorder %s24, 4
      // Predicated region
      $region21: #{sql_encoder_forward.1} parent=5 // pred_check
        %p308 = pneg %p307
      $region22: #{sql_encoder_forward.1} parent=5 // pred_check_branch
        %310 = sbr.rel (%p308) target = $region24
      $region23: #{sql_encoder_forward.1} parent=5 // pred_region
        // Predicated region
        $region25: #{sql_encoder_forward.1} parent=23 // pred_check
          %p311 = pneg %p56
        $region26: #{sql_encoder_forward.1} parent=23 // pred_check_branch
          %313 = sbr.rel (%p311) target = $region28
        $region27: #{sql_encoder_forward.1} parent=23 // pred_region
          %s314 = smul.u32 2, %s31
          %p315 = scmp.lt.s32.totalorder %s314, 3
          %s316 = scalar_select %p315, %s314, 3
          %s317 = smul.addr %s316, 4
          %s318 = scalar_lea.vmem %s0, %s317
          %s319 = smul.u32 2, %s31
        $region28: #{sql_encoder_forward.1} parent=23 // pred_fallthru
          _
        // Predicated region
        $region29: #{sql_encoder_forward.1} parent=23 // pred_check
          %p320 = pneg %p124
        $region30: #{sql_encoder_forward.1} parent=23 // pred_check_branch
          %322 = sbr.rel (%p320) target = $region32
        $region31: #{sql_encoder_forward.1} parent=23 // pred_region
          %p323 = scmp.lt.s32.totalorder %s32, 1
          %s324 = scalar_select %p323, %s32, 1
          %s325 = smul.addr %s324, 48
          %s326 = smul.addr %s325, 4
          %s327 = scalar_lea.vmem %s3, %s326
        $region32: #{sql_encoder_forward.1} parent=23 // pred_fallthru
          _
        // Predicated region
        $region33: #{sql_encoder_forward.1} parent=23 // pred_check
          %p328 = pneg %p150
        $region34: #{sql_encoder_forward.1} parent=23 // pred_check_branch
          %330 = sbr.rel (%p328) target = $region36
        $region35: #{sql_encoder_forward.1} parent=23 // pred_region
          %s331 = sand.u32 %s140, 1
          %s332 = scalar_lea.sflag [#allocation4], %s331
          %s333 = sand.u32 %s140, 1
          %s334 = smul.addr %s333, 64
          %s335 = scalar_lea.vmem [#allocation3], %s334
          %s337 = ssub.s32 1024, 1024
          %338 = vsyncadd %s332, %s337
          %s339 = smul.addr %s32, 16
          %s340 = smul.addr %s339, 64
          %s341 = scalar_lea.hbm %s4, %s340
          %s342 = sshll.u32 %s335, 4
          %s343 = int_to_ptr.vmem [resolvable:$true] %s342
          %348 = dma.hbm_to_vmem [thread:$0]  %s341, 1024, %s343, %s332, 64, 64, 4
        $region36: #{sql_encoder_forward.1} parent=23 // pred_fallthru
          _
        // Predicated region
        $region37: #{sql_encoder_forward.1} parent=23 // pred_check
          %p349 = pneg %p176
        $region38: #{sql_encoder_forward.1} parent=23 // pred_check_branch
          %351 = sbr.rel (%p349) target = $region40
        $region39: #{sql_encoder_forward.1} parent=23 // pred_region
          %s352 = sand.u32 %s24, 1
          %s353 = scalar_lea.sflag [#allocation7], %s352
          %s354 = sand.u32 %s166, 1
          %s355 = smul.addr %s354, 128
          %s356 = scalar_lea.vmem [#allocation6], %s355
          %s358 = ssub.s32 2048, 2048
          %359 = vsyncadd %s353, %s358
          %s360 = smul.addr %s32, 32
          %s361 = smul.addr %s360, 64
          %s362 = scalar_lea.hbm %s5, %s361
          %s363 = sshll.u32 %s356, 4
          %s364 = int_to_ptr.vmem [resolvable:$true] %s363
          %369 = dma.hbm_to_vmem [thread:$0]  %s362, 2048, %s364, %s353, 128, 128, 8
        $region40: #{sql_encoder_forward.1} parent=23 // pred_fallthru
          _
        // Predicated region
        $region41: #{sql_encoder_forward.1} parent=23 // pred_check
          %p370 = pneg %p202
        $region42: #{sql_encoder_forward.1} parent=23 // pred_check_branch
          %372 = sbr.rel (%p370) target = $region44
        $region43: #{sql_encoder_forward.1} parent=23 // pred_region
          %s373 = sand.u32 %s24, 1
          %s374 = scalar_lea.sflag [#allocation7], %s373
          %s375 = sand.u32 %s192, 1
          %s376 = smul.addr %s375, 128
          %s377 = scalar_lea.vmem [#allocation8], %s376
          %s379 = ssub.s32 2048, 2048
          %380 = vsyncadd %s374, %s379
          %s381 = smul.addr %s32, 32
          %s382 = smul.addr %s381, 64
          %s383 = scalar_lea.hbm %s6, %s382
          %s384 = sshll.u32 %s377, 4
          %s385 = int_to_ptr.vmem [resolvable:$true] %s384
          %390 = dma.hbm_to_vmem [thread:$0]  %s383, 2048, %s385, %s374, 64, 64, 4
        $region44: #{sql_encoder_forward.1} parent=23 // pred_fallthru
          _
        // Predicated region
        $region45: #{sql_encoder_forward.1} parent=23 // pred_check
          %p391 = pneg %p228
        $region46: #{sql_encoder_forward.1} parent=23 // pred_check_branch
          %393 = sbr.rel (%p391) target = $region48
        $region47: #{sql_encoder_forward.1} parent=23 // pred_region
          %p394 = scmp.lt.s32.totalorder %s32, 1
          %s395 = scalar_select %p394, %s32, 1
          %s396 = smul.addr %s395, 2
          %s397 = smul.addr %s396, 8
          %s398 = scalar_lea.vmem %s7, %s397
        $region48: #{sql_encoder_forward.1} parent=23 // pred_fallthru
          _
        // Predicated region
        $region49: #{sql_encoder_forward.1} parent=23 // pred_check
          %p399 = pneg %p254
        $region50: #{sql_encoder_forward.1} parent=23 // pred_check_branch
          %401 = sbr.rel (%p399) target = $region52
        $region51: #{sql_encoder_forward.1} parent=23 // pred_region
          %p402 = scmp.lt.s32.totalorder %s32, 1
          %s403 = scalar_select %p402, %s32, 1
          %s404 = smul.addr %s403, 2
          %s405 = scalar_lea.vmem %s8, %s404
        $region52: #{sql_encoder_forward.1} parent=23 // pred_fallthru
          _
      $region24: #{sql_encoder_forward.1} parent=5 // pred_fallthru
        _
      %p406 = scmp.le.s32.totalorder 1, %s24
      %p407 = scmp.lt.s32.totalorder %s24, 5
      %p408 = pnand %p406, %p407
      %p409 = pneg %p408
      // Predicated region
      $region53: #{sql_encoder_forward.1} parent=5 // pred_check
        _
      $region54: #{sql_encoder_forward.1} parent=5 // pred_check_branch
        %411 = sbr.rel (%p408) target = $region56
      $region55: #{sql_encoder_forward.1} parent=5 // pred_region
        %s412 = ssub.s32 %s24, 1
        %s413 = sand.u32 %s143, 1
        %s414 = scalar_lea.sflag [#allocation4], %s413
        %s415 = sand.u32 %s143, 1
        %s416 = smul.addr %s415, 64
        %s417 = scalar_lea.vmem [#allocation3], %s416
        // Predicated region
        $region57: #{sql_encoder_forward.1} parent=55 // pred_check
          %p418 = pneg %p156
        $region58: #{sql_encoder_forward.1} parent=55 // pred_check_branch
          %420 = sbr.rel (%p418) target = $region60
        $region59: #{sql_encoder_forward.1} parent=55 // pred_region
          %421 = dma.done %s414, 1024
        $region60: #{sql_encoder_forward.1} parent=55 // pred_fallthru
          _
        %s422 = sand.u32 %s29, 1
        %s423 = scalar_lea.sflag [#allocation7], %s422
        %s424 = sand.u32 %s169, 1
        %s425 = smul.addr %s424, 128
        %s426 = scalar_lea.vmem [#allocation6], %s425
        // Predicated region
        $region61: #{sql_encoder_forward.1} parent=55 // pred_check
          %p427 = pneg %p182
        $region62: #{sql_encoder_forward.1} parent=55 // pred_check_branch
          %429 = sbr.rel (%p427) target = $region64
        $region63: #{sql_encoder_forward.1} parent=55 // pred_region
          %430 = dma.done %s423, 2048
        $region64: #{sql_encoder_forward.1} parent=55 // pred_fallthru
          _
        %s431 = sand.u32 %s29, 1
        %s432 = scalar_lea.sflag [#allocation7], %s431
        %s433 = sand.u32 %s195, 1
        %s434 = smul.addr %s433, 128
        %s435 = scalar_lea.vmem [#allocation8], %s434
        // Predicated region
        $region65: #{sql_encoder_forward.1} parent=55 // pred_check
          %p436 = pneg %p208
        $region66: #{sql_encoder_forward.1} parent=55 // pred_check_branch
          %438 = sbr.rel (%p436) target = $region68
        $region67: #{sql_encoder_forward.1} parent=55 // pred_region
          %439 = dma.done %s432, 2048
        $region68: #{sql_encoder_forward.1} parent=55 // pred_fallthru
          _
        %s440 = smul.u32 2, %s33
        %p441 = scmp.lt.s32.totalorder %s440, 3
        %s442 = scalar_select %p441, %s440, 3
        %s443 = smul.addr %s442, 4
        %s444 = scalar_lea.vmem %s0, %s443
        %p445 = pneg %p62
        %p446 = pneg %p59
        %p447 = pneg %p83
        %p448 = pneg %p80
        %p449 = pneg %p104
        %p450 = pneg %p101
        %p451 = scmp.lt.s32.totalorder %s34, 1
        %s452 = scalar_select %p451, %s34, 1
        %s453 = smul.addr %s452, 48
        %s454 = smul.addr %s453, 4
        %s455 = scalar_lea.vmem %s3, %s454
        %p456 = pneg %p130
        %p457 = pneg %p127
        %s458 = sand.u32 %s143, 1
        %s459 = scalar_lea.sflag [#allocation4], %s458
        %s460 = sand.u32 %s143, 1
        %s461 = smul.addr %s460, 64
        %s462 = scalar_lea.vmem [#allocation3], %s461
        %p463 = pneg %p156
        %p464 = pneg %p153
        %s465 = sand.u32 %s29, 1
        %s466 = scalar_lea.sflag [#allocation7], %s465
        %s467 = sand.u32 %s169, 1
        %s468 = smul.addr %s467, 128
        %s469 = scalar_lea.vmem [#allocation6], %s468
        %p470 = pneg %p182
        %p471 = pneg %p179
        %s472 = sand.u32 %s29, 1
        %s473 = scalar_lea.sflag [#allocation7], %s472
        %s474 = sand.u32 %s195, 1
        %s475 = smul.addr %s474, 128
        %s476 = scalar_lea.vmem [#allocation8], %s475
        %p477 = pneg %p208
        %p478 = pneg %p205
        %p479 = scmp.lt.s32.totalorder %s34, 1
        %s480 = scalar_select %p479, %s34, 1
        %s481 = smul.addr %s480, 2
        %s482 = smul.addr %s481, 8
        %s483 = scalar_lea.vmem %s7, %s482
        %p484 = pneg %p234
        %p485 = pneg %p231
        %p486 = scmp.lt.s32.totalorder %s34, 1
        %s487 = scalar_select %p486, %s34, 1
        %s488 = smul.addr %s487, 2
        %s489 = scalar_lea.vmem %s8, %s488
        %p490 = pneg %p260
        %p491 = pneg %p257
        %p492 = pneg %p286
        %p493 = pneg %p283
        %s494 = sand.u32 %s273, 1
        %s495 = scalar_lea.sflag [#allocation5], %s494
        %s496 = sand.u32 %s273, 1
        %s497 = smul.addr %s496, 8
        %s498 = scalar_lea.vmem [#allocation9], %s497
        %s499 = smul.u32 2, %s33
        %p500 = scmp.lt.s32.totalorder %s499, 3
        %s501 = scalar_select %p500, %s499, 3
        %s502 = smul.addr %s501, 4
        %s503 = scalar_lea.vmem %s0, %s502
        %s504 = smul.u32 2, %s33
        %p505 = scmp.lt.s32.totalorder %s34, 1
        %s506 = scalar_select %p505, %s34, 1
        %s507 = smul.addr %s506, 48
        %s508 = smul.addr %s507, 4
        %s509 = scalar_lea.vmem %s3, %s508
        %p510 = scmp.lt.s32.totalorder %s34, 1
        %s511 = scalar_select %p510, %s34, 1
        %s512 = smul.addr %s511, 2
        %s513 = smul.addr %s512, 8
        %s514 = scalar_lea.vmem %s7, %s513
        %p515 = scmp.lt.s32.totalorder %s34, 1
        %s516 = scalar_select %p515, %s34, 1
        %s517 = smul.addr %s516, 2
        %s518 = scalar_lea.vmem %s8, %s517
        %s519 = smul.u32 2, %s33
        %p521 = scmp.eq.s32.totalorder %s34, 0
        // Predicated region
        $region69: #{sql_encoder_forward.1} parent=55 // pred_check
          %p522 = pneg %p521
        $region70: #{sql_encoder_forward.1} parent=55 // pred_check_branch
          %524 = sbr.rel (%p522) target = $region72
        $region71: #{sql_encoder_forward.1} parent=55 // pred_region
          %v525 = vld [vmem:[%s503] sm:$0xf]
          %v526 = vld [vmem:[%s503 + $0x4] sm:$0xf]
          %v527 = vunpack.c.l.bf16 %v525
          %v528 = vunpack.c.l.bf16 %v526
          %v529 = vld [vmem:[%s1] sm:$0x1]
          %v530 = vld [vmem:[%s2] sm:$0x1]
          %531 = vadd.xlane.f32.xlu0 %v527
          %v532 = vpop.xlane.xlu0 %531
          %533 = vadd.xlane.f32.xlu0 %v528
          %v534 = vpop.xlane.xlu0 %533
          %v535 = vrcp.pop 128.0
          %v536 = vmul.f32 %v532, %v535
          %v537 = vmul.f32 %v534, %v535
          %v538 = vsub.f32 %v527, %v536
          %v539 = vsub.f32 %v528, %v537
          %v540 = vmul.f32 %v538, %v538
          %v541 = vmul.f32 %v539, %v539
          %542 = vadd.xlane.f32.xlu0 %v540
          %v543 = vpop.xlane.xlu0 %542
          %544 = vadd.xlane.f32.xlu0 %v541
          %v545 = vpop.xlane.xlu0 %544
          %v546 = vmul.f32 %v543, %v535
          %v547 = vmul.f32 %v545, %v535
          %v548 = vadd.f32 %v546, 1e-12
          %v549 = vadd.f32 %v547, 1e-12
          %v550 = vrsqrt.pop %v548
          %v551 = vrsqrt.pop %v549
          %v552 = vmul.f32 %v538, %v550
          %v553 = vmul.f32 %v539, %v551
          %v555 = vlaneseq
          %v556 = vshrl.u32 %v555, 7
          %v557 = vsub.s32 0, %v556
          %v558 = vrot.slane %v529, %v557
          %v560 = vmul.f32 %v552, %v558
          %v561 = vmul.f32 %v553, %v558
          %v563 = vlaneseq
          %v564 = vshrl.u32 %v563, 7
          %v565 = vsub.s32 0, %v564
          %v566 = vrot.slane %v530, %v565
          %v568 = vadd.f32 %v560, %v566
          %v569 = vadd.f32 %v561, %v566
          %570 = vst [vmem:[#allocation2] sm:$0xff] %v568
          %571 = vst [vmem:[#allocation2 + $0x8] sm:$0xff] %v569
        $region72: #{sql_encoder_forward.1} parent=55 // pred_fallthru
          _
        %v572 = vld [vmem:[#allocation2] sm:$0xff]
        %v573 = vld [vmem:[#allocation2 + $0x8] sm:$0xff]
        %v574 = vld [vmem:[%s514] sm:$0xff]
        %v575 = vld [vmem:[%s514 + $0x8] sm:$0xff]
        %v576 = vpack.c.bf16 %v573, %v572
        %v577 = vld [vmem:[%s509] sm:$0xff]
        %v578 = vld [vmem:[%s509 + $0x8] sm:$0xf]
        %v579 = vld [vmem:[%s509 + $0xc] sm:$0xff]
        %v580 = vld [vmem:[%s509 + $0x14] sm:$0xf]
        %v581 = vld [vmem:[%s509 + $0x18] sm:$0xff]
        %v582 = vld [vmem:[%s509 + $0x20] sm:$0xf]
        %v583 = vld [vmem:[%s509 + $0x24] sm:$0xff]
        %v584 = vld [vmem:[%s509 + $0x2c] sm:$0xf]
        %v585 = vld [vmem:[%s509 + $0x30] sm:$0xff]
        %v586 = vld [vmem:[%s509 + $0x38] sm:$0xf]
        %v587 = vld [vmem:[%s509 + $0x3c] sm:$0xff]
        %v588 = vld [vmem:[%s509 + $0x44] sm:$0xf]
        %v589 = vld [vmem:[%s509 + $0x48] sm:$0xff]
        %v590 = vld [vmem:[%s509 + $0x50] sm:$0xf]
        %v591 = vld [vmem:[%s509 + $0x54] sm:$0xff]
        %v592 = vld [vmem:[%s509 + $0x5c] sm:$0xf]
        %v593 = vld [vmem:[%s509 + $0x60] sm:$0xff]
        %v594 = vld [vmem:[%s509 + $0x68] sm:$0xf]
        %v595 = vld [vmem:[%s509 + $0x6c] sm:$0xff]
        %v596 = vld [vmem:[%s509 + $0x74] sm:$0xf]
        %v597 = vld [vmem:[%s509 + $0x78] sm:$0xff]
        %v598 = vld [vmem:[%s509 + $0x80] sm:$0xf]
        %v599 = vld [vmem:[%s509 + $0x84] sm:$0xff]
        %v600 = vld [vmem:[%s509 + $0x8c] sm:$0xf]
        %v601 = vld [vmem:[%s509 + $0x90] sm:$0xff]
        %v602 = vld [vmem:[%s509 + $0x98] sm:$0xf]
        %v603 = vld [vmem:[%s509 + $0x9c] sm:$0xff]
        %v604 = vld [vmem:[%s509 + $0xa4] sm:$0xf]
        %v605 = vld [vmem:[%s509 + $0xa8] sm:$0xff]
        %v606 = vld [vmem:[%s509 + $0xb0] sm:$0xf]
        %v607 = vld [vmem:[%s509 + $0xb4] sm:$0xff]
        %v608 = vld [vmem:[%s509 + $0xbc] sm:$0xf]
        %v641 = vunpack.c.l.b16 %v577
        %v642 = vunpack.c.h.b16 %v577
        %v643 = vunpack.c.l.b16 %v578
        %v644 = vunpack.c.l.b16 %v579
        %v645 = vunpack.c.h.b16 %v579
        %v646 = vunpack.c.l.b16 %v580
        %v647 = vunpack.c.l.b16 %v581
        %v648 = vunpack.c.h.b16 %v581
        %v649 = vunpack.c.l.b16 %v582
        %v650 = vunpack.c.l.b16 %v583
        %v651 = vunpack.c.h.b16 %v583
        %v652 = vunpack.c.l.b16 %v584
        %v653 = vunpack.c.l.b16 %v585
        %v654 = vunpack.c.h.b16 %v585
        %v655 = vunpack.c.l.b16 %v586
        %v656 = vunpack.c.l.b16 %v587
        %v657 = vunpack.c.h.b16 %v587
        %v658 = vunpack.c.l.b16 %v588
        %v659 = vunpack.c.l.b16 %v589
        %v660 = vunpack.c.h.b16 %v589
        %v661 = vunpack.c.l.b16 %v590
        %v662 = vunpack.c.l.b16 %v591
        %v663 = vunpack.c.h.b16 %v591
        %v664 = vunpack.c.l.b16 %v592
        %v665 = vunpack.c.l.b16 %v593
        %v666 = vunpack.c.h.b16 %v593
        %v667 = vunpack.c.l.b16 %v594
        %v668 = vunpack.c.l.b16 %v595
        %v669 = vunpack.c.h.b16 %v595
        %v670 = vunpack.c.l.b16 %v596
        %v671 = vunpack.c.l.b16 %v597
        %v672 = vunpack.c.h.b16 %v597
        %v673 = vunpack.c.l.b16 %v598
        %v674 = vunpack.c.l.b16 %v599
        %v675 = vunpack.c.h.b16 %v599
        %v676 = vunpack.c.l.b16 %v600
        %v677 = vunpack.c.l.b16 %v601
        %v678 = vunpack.c.h.b16 %v601
        %v679 = vunpack.c.l.b16 %v602
        %v680 = vunpack.c.l.b16 %v603
        %v681 = vunpack.c.h.b16 %v603
        %v682 = vunpack.c.l.b16 %v604
        %v683 = vunpack.c.l.b16 %v605
        %v684 = vunpack.c.h.b16 %v605
        %v685 = vunpack.c.l.b16 %v606
        %v686 = vunpack.c.l.b16 %v607
        %v687 = vunpack.c.h.b16 %v607
        %v688 = vunpack.c.l.b16 %v608
        %v689 = vpack.c.b16 %v644, %v641
        %v690 = vpack.c.b16 %v645, %v642
        %v691 = vpack.c.b16 %v646, %v643
        %v692 = vpack.c.b16 %v650, %v647
        %v693 = vpack.c.b16 %v651, %v648
        %v694 = vpack.c.b16 %v652, %v649
        %v695 = vpack.c.b16 %v656, %v653
        %v696 = vpack.c.b16 %v657, %v654
        %v697 = vpack.c.b16 %v658, %v655
        %v698 = vpack.c.b16 %v662, %v659
        %v699 = vpack.c.b16 %v663, %v660
        %v700 = vpack.c.b16 %v664, %v661
        %v701 = vpack.c.b16 %v668, %v665
        %v702 = vpack.c.b16 %v669, %v666
        %v703 = vpack.c.b16 %v670, %v667
        %v704 = vpack.c.b16 %v674, %v671
        %v705 = vpack.c.b16 %v675, %v672
        %v706 = vpack.c.b16 %v676, %v673
        %v707 = vpack.c.b16 %v680, %v677
        %v708 = vpack.c.b16 %v681, %v678
        %v709 = vpack.c.b16 %v682, %v679
        %v710 = vpack.c.b16 %v686, %v683
        %v711 = vpack.c.b16 %v687, %v684
        %v712 = vpack.c.b16 %v688, %v685
        %737 = vmatprep.subr.bf16.mxu0 %v690
        %738 = vmatpush1.bf16.msra.mxu0 %v689
        %739 = vmatprep.subr.bf16.mxu0 %v693
        %740 = vmatpush1.bf16.msra.mxu0 %v692
        %741 = vmatprep.subr.bf16.mxu0 %v696
        %742 = vmatpush1.bf16.msra.mxu0 %v695
        %743 = vmatprep.subr.bf16.mxu0 %v699
        %744 = vmatpush1.bf16.msra.mxu0 %v698
        %745 = vmatprep.subr.bf16.mxu0 %v702
        %746 = vmatpush1.bf16.msra.mxu0 %v701
        %747 = vmatprep.subr.bf16.mxu0 %v705
        %748 = vmatpush1.bf16.msra.mxu0 %v704
        %749 = vmatprep.subr.bf16.mxu0 %v708
        %750 = vmatpush1.bf16.msra.mxu0 %v707
        %751 = vmatprep.subr.bf16.mxu0 %v711
        %752 = vmatpush1.bf16.msra.mxu0 %v710
        %753 = vmatprep.subr.bf16.mxu0 0
        %754 = vmatpush1.bf16.msra.mxu0 0
        %755 = vmatprep.subr.bf16.mxu0 0
        %756 = vmatpush1.bf16.msra.mxu0 0
        %757 = vmatprep.subr.bf16.mxu0 0
        %758 = vmatpush1.bf16.msra.mxu0 0
        %759 = vmatprep.subr.bf16.mxu0 0
        %760 = vmatpush1.bf16.msra.mxu0 0
        %761 = vmatprep.subr.bf16.mxu0 0
        %762 = vmatpush1.bf16.msra.mxu0 0
        %763 = vmatprep.subr.bf16.mxu0 0
        %764 = vmatpush1.bf16.msra.mxu0 0
        %765 = vmatprep.subr.bf16.mxu0 0
        %766 = vmatpush1.bf16.msra.mxu0 0
        %767 = vmatprep.subr.bf16.mxu0 0
        %768 = vmatpush1.bf16.msra.mxu0 0
        %769 = vmatprep.mubr.bf16.mxu0 0
        %770 = vmatmul.mubr.bf16.gmra.mrb[0].mxu0 %v576
        %v771 = vpop.f32.mrb[0].mxu0
        %v772 = vadd.f32 0.0, %v771
        %v773 = vpop.f32.mrb[0].mxu0
        %v774 = vadd.f32 0.0, %v773
        %v775 = vpop.f32.mrb[0].mxu0
        %v776 = vadd.f32 0.0, %v775
        %v777 = vpop.f32.mrb[0].mxu0
        %v778 = vadd.f32 0.0, %v777
        %779 = vdwg.mxu0
        %780 = vmatprep.subr.bf16.mxu0 0
        %781 = vmatpush1.bf16.msra.mxu0 %v691
        %782 = vmatprep.subr.bf16.mxu0 0
        %783 = vmatpush1.bf16.msra.mxu0 %v694
        %784 = vmatprep.subr.bf16.mxu0 0
        %785 = vmatpush1.bf16.msra.mxu0 %v697
        %786 = vmatprep.subr.bf16.mxu0 0
        %787 = vmatpush1.bf16.msra.mxu0 %v700
        %788 = vmatprep.subr.bf16.mxu0 0
        %789 = vmatpush1.bf16.msra.mxu0 %v703
        %790 = vmatprep.subr.bf16.mxu0 0
        %791 = vmatpush1.bf16.msra.mxu0 %v706
        %792 = vmatprep.subr.bf16.mxu0 0
        %793 = vmatpush1.bf16.msra.mxu0 %v709
        %794 = vmatprep.subr.bf16.mxu0 0
        %795 = vmatpush1.bf16.msra.mxu0 %v712
        %796 = vmatprep.subr.bf16.mxu0 0
        %797 = vmatpush1.bf16.msra.mxu0 0
        %798 = vmatprep.subr.bf16.mxu0 0
        %799 = vmatpush1.bf16.msra.mxu0 0
        %800 = vmatprep.subr.bf16.mxu0 0
        %801 = vmatpush1.bf16.msra.mxu0 0
        %802 = vmatprep.subr.bf16.mxu0 0
        %803 = vmatpush1.bf16.msra.mxu0 0
        %804 = vmatprep.subr.bf16.mxu0 0
        %805 = vmatpush1.bf16.msra.mxu0 0
        %806 = vmatprep.subr.bf16.mxu0 0
        %807 = vmatpush1.bf16.msra.mxu0 0
        %808 = vmatprep.subr.bf16.mxu0 0
        %809 = vmatpush1.bf16.msra.mxu0 0
        %810 = vmatprep.subr.bf16.mxu0 0
        %811 = vmatpush1.bf16.msra.mxu0 0
        %812 = vmatprep.mubr.bf16.mxu0 0
        %813 = vmatmul.mubr.bf16.gmra.mrb[0].mxu0 %v576
        %v814 = vpop.f32.mrb[0].mxu0
        %v815 = vadd.f32 0.0, %v814
        %v816 = vpop.f32.mrb[0].mxu0
        %v817 = vpop.f32.mrb[0].mxu0
        %v818 = vadd.f32 0.0, %v817
        %v819 = vpop.f32.mrb[0].mxu0
        %820 = vdwg.mxu0
        %v821 = vlaneseq
        %v822 = vshrl.u32 %v821, 7
        %v823 = vsub.s32 0, %v822
        %v824 = vrot.slane %v574, %v823
        %v825 = vadd.f32 %v772, %v824
        %v826 = vadd.f32 %v776, %v824
        %v827 = vlaneseq
        %v828 = vshrl.u32 %v827, 7
        %v829 = vsub.s32 1, %v828
        %v830 = vrot.slane %v574, %v829
        %v831 = vadd.f32 %v774, %v830
        %v832 = vadd.f32 %v778, %v830
        %v833 = vlaneseq
        %v834 = vshrl.u32 %v833, 7
        %v835 = vsub.s32 2, %v834
        %v836 = vrot.slane %v574, %v835
        %v837 = vadd.f32 %v815, %v836
        %v838 = vadd.f32 %v818, %v836
        %v839 = vld [vmem:[%s417] sm:$0xf]
        %v840 = vld [vmem:[%s417 + $0x4] sm:$0xf]
        %v841 = vld [vmem:[%s417 + $0x8] sm:$0xf]
        %v842 = vld [vmem:[%s417 + $0xc] sm:$0xf]
        %v843 = vld [vmem:[%s417 + $0x10] sm:$0xf]
        %v844 = vld [vmem:[%s417 + $0x14] sm:$0xf]
        %v845 = vld [vmem:[%s417 + $0x18] sm:$0xf]
        %v846 = vld [vmem:[%s417 + $0x1c] sm:$0xf]
        %v847 = vld [vmem:[%s417 + $0x20] sm:$0xf]
        %v848 = vld [vmem:[%s417 + $0x24] sm:$0xf]
        %v849 = vld [vmem:[%s417 + $0x28] sm:$0xf]
        %v850 = vld [vmem:[%s417 + $0x2c] sm:$0xf]
        %v851 = vld [vmem:[%s417 + $0x30] sm:$0xf]
        %v852 = vld [vmem:[%s417 + $0x34] sm:$0xf]
        %v853 = vld [vmem:[%s417 + $0x38] sm:$0xf]
        %v854 = vld [vmem:[%s417 + $0x3c] sm:$0xf]
        %v855 = vpack.c.bf16 %v825, %v825
        %v856 = vpack.c.bf16 %v826, %v826
        %v857 = vpack.c.bf16 %v831, %v831
        %v858 = vpack.c.bf16 %v832, %v832
        %v859 = vpack.c.bf16 %v837, %v837
        %v860 = vpack.c.bf16 %v838, %v838
        %vm861 = vcmask 261120
        %v863 = vsel %vm861, %v855, 0
        %v866 = vsel %vm861, %v857, 0
        %868 = vmatprep.subr.bf16.mxu0 0
        %869 = vmatpush1.bf16.xpose.msra.mxu0 %v866
        %870 = vmatprep.subr.bf16.mxu0 0
        %871 = vmatpush1.bf16.xpose.msra.mxu0 0
        %872 = vmatprep.subr.bf16.mxu0 0
        %873 = vmatpush1.bf16.xpose.msra.mxu0 0
        %874 = vmatprep.subr.bf16.mxu0 0
        %875 = vmatpush1.bf16.xpose.msra.mxu0 0
        %876 = vmatprep.subr.bf16.mxu0 0
        %877 = vmatpush1.bf16.xpose.msra.mxu0 0
        %878 = vmatprep.subr.bf16.mxu0 0
        %879 = vmatpush1.bf16.xpose.msra.mxu0 0
        %880 = vmatprep.subr.bf16.mxu0 0
        %881 = vmatpush1.bf16.xpose.msra.mxu0 0
        %882 = vmatprep.subr.bf16.mxu0 0
        %883 = vmatpush1.bf16.xpose.msra.mxu0 0
        %884 = vmatprep.subr.bf16.mxu0 0
        %885 = vmatpush1.bf16.xpose.msra.mxu0 0
        %886 = vmatprep.subr.bf16.mxu0 0
        %887 = vmatpush1.bf16.xpose.msra.mxu0 0
        %888 = vmatprep.subr.bf16.mxu0 0
        %889 = vmatpush1.bf16.xpose.msra.mxu0 0
        %890 = vmatprep.subr.bf16.mxu0 0
        %891 = vmatpush1.bf16.xpose.msra.mxu0 0
        %892 = vmatprep.subr.bf16.mxu0 0
        %893 = vmatpush1.bf16.xpose.msra.mxu0 0
        %894 = vmatprep.subr.bf16.mxu0 0
        %895 = vmatpush1.bf16.xpose.msra.mxu0 0
        %896 = vmatprep.subr.bf16.mxu0 0
        %897 = vmatpush1.bf16.xpose.msra.mxu0 0
        %898 = vmatprep.subr.bf16.mxu0 0
        %899 = vmatpush1.bf16.xpose.msra.mxu0 0
        %900 = vmatprep.mubr.bf16.mxu0 0
        %901 = vmatmul.mubr.bf16.gmra.mrb[0].mxu0 %v863
        %v902 = vpop.f32.mrb[0].mxu0
        %v903 = vadd.f32 0.0, %v902
        %v904 = vpop.f32.mrb[0].mxu0
        %v905 = vpop.f32.mrb[0].mxu0
        %v906 = vpop.f32.mrb[0].mxu0
        %907 = vdwg.mxu0
        %v909 = vsel %vm861, %v856, 0
        %v912 = vsel %vm861, %v858, 0
        %914 = vmatprep.subr.bf16.mxu0 0
        %915 = vmatpush1.bf16.xpose.msra.mxu0 %v912
        %916 = vmatprep.subr.bf16.mxu0 0
        %917 = vmatpush1.bf16.xpose.msra.mxu0 0
        %918 = vmatprep.subr.bf16.mxu0 0
        %919 = vmatpush1.bf16.xpose.msra.mxu0 0
        %920 = vmatprep.subr.bf16.mxu0 0
        %921 = vmatpush1.bf16.xpose.msra.mxu0 0
        %922 = vmatprep.subr.bf16.mxu0 0
        %923 = vmatpush1.bf16.xpose.msra.mxu0 0
        %924 = vmatprep.subr.bf16.mxu0 0
        %925 = vmatpush1.bf16.xpose.msra.mxu0 0
        %926 = vmatprep.subr.bf16.mxu0 0
        %927 = vmatpush1.bf16.xpose.msra.mxu0 0
        %928 = vmatprep.subr.bf16.mxu0 0
        %929 = vmatpush1.bf16.xpose.msra.mxu0 0
        %930 = vmatprep.subr.bf16.mxu0 0
        %931 = vmatpush1.bf16.xpose.msra.mxu0 0
        %932 = vmatprep.subr.bf16.mxu0 0
        %933 = vmatpush1.bf16.xpose.msra.mxu0 0
        %934 = vmatprep.subr.bf16.mxu0 0
        %935 = vmatpush1.bf16.xpose.msra.mxu0 0
        %936 = vmatprep.subr.bf16.mxu0 0
        %937 = vmatpush1.bf16.xpose.msra.mxu0 0
        %938 = vmatprep.subr.bf16.mxu0 0
        %939 = vmatpush1.bf16.xpose.msra.mxu0 0
        %940 = vmatprep.subr.bf16.mxu0 0
        %941 = vmatpush1.bf16.xpose.msra.mxu0 0
        %942 = vmatprep.subr.bf16.mxu0 0
        %943 = vmatpush1.bf16.xpose.msra.mxu0 0
        %944 = vmatprep.subr.bf16.mxu0 0
        %945 = vmatpush1.bf16.xpose.msra.mxu0 0
        %946 = vmatprep.mubr.bf16.mxu0 0
        %947 = vmatmul.mubr.bf16.gmra.mrb[0].mxu0 %v909
        %v948 = vpop.f32.mrb[0].mxu0
        %v949 = vadd.f32 0.0, %v948
        %v950 = vpop.f32.mrb[0].mxu0
        %v951 = vpop.f32.mrb[0].mxu0
        %v952 = vpop.f32.mrb[0].mxu0
        %953 = vdwg.mxu0
        %vm954 = vcmask 64512
        %v955 = vsel %vm954, %v903, -inf
        %956 = vmax.xlane.f32.xlu0 %v955
        %v957 = vpop.xlane.xlu0 %956
        %v958 = vsel %vm954, %v949, -inf
        %959 = vmax.xlane.f32.xlu0 %v958
        %v960 = vpop.xlane.xlu0 %959
        %v961 = vsub.f32 %v903, %v957
        %v962 = vsub.f32 %v949, %v960
        %v963 = vmul.f32 %v961, 1.442695
        %v964 = vpow.pop %v963
        %v965 = vmul.f32 %v962, 1.442695
        %v966 = vpow.pop %v965
        %v967 = vsel %vm954, %v964, 0.0
        %968 = vadd.xlane.f32.xlu0 %v967
        %v969 = vpop.xlane.xlu0 %968
        %v970 = vsel %vm954, %v966, 0.0
        %971 = vadd.xlane.f32.xlu0 %v970
        %v972 = vpop.xlane.xlu0 %971
        %v973 = vrcp.pop %v969
        %v974 = vrcp.pop %v972
        %v975 = vmul.f32 %v964, %v973
        %v976 = vmul.f32 %v966, %v974
        %v977 = vpack.c.bf16 %v975, %v975
        %v978 = vpack.c.bf16 %v976, %v976
        %v980 = vsel %vm954, %v977, 0
        %vm982 = vcmask 1043456
        %v984 = vsel %vm982, %v859, 0
        %986 = vmatprep.subr.bf16.mxu0 0
        %987 = vmatpush1.bf16.msra.mxu0 %v984
        %988 = vmatprep.subr.bf16.mxu0 0
        %989 = vmatpush1.bf16.msra.mxu0 0
        %990 = vmatprep.subr.bf16.mxu0 0
        %991 = vmatpush1.bf16.msra.mxu0 0
        %992 = vmatprep.subr.bf16.mxu0 0
        %993 = vmatpush1.bf16.msra.mxu0 0
        %994 = vmatprep.subr.bf16.mxu0 0
        %995 = vmatpush1.bf16.msra.mxu0 0
        %996 = vmatprep.subr.bf16.mxu0 0
        %997 = vmatpush1.bf16.msra.mxu0 0
        %998 = vmatprep.subr.bf16.mxu0 0
        %999 = vmatpush1.bf16.msra.mxu0 0
        %1000 = vmatprep.subr.bf16.mxu0 0
        %1001 = vmatpush1.bf16.msra.mxu0 0
        %1002 = vmatprep.subr.bf16.mxu0 0
        %1003 = vmatpush1.bf16.msra.mxu0 0
        %1004 = vmatprep.subr.bf16.mxu0 0
        %1005 = vmatpush1.bf16.msra.mxu0 0
        %1006 = vmatprep.subr.bf16.mxu0 0
        %1007 = vmatpush1.bf16.msra.mxu0 0
        %1008 = vmatprep.subr.bf16.mxu0 0
        %1009 = vmatpush1.bf16.msra.mxu0 0
        %1010 = vmatprep.subr.bf16.mxu0 0
        %1011 = vmatpush1.bf16.msra.mxu0 0
        %1012 = vmatprep.subr.bf16.mxu0 0
        %1013 = vmatpush1.bf16.msra.mxu0 0
        %1014 = vmatprep.subr.bf16.mxu0 0
        %1015 = vmatpush1.bf16.msra.mxu0 0
        %1016 = vmatprep.subr.bf16.mxu0 0
        %1017 = vmatpush1.bf16.msra.mxu0 0
        %1018 = vmatprep.mubr.bf16.mxu0 0
        %1019 = vmatmul.mubr.bf16.gmra.mrb[0].mxu0 %v980
        %v1020 = vpop.f32.mrb[0].mxu0
        %v1021 = vadd.f32 0.0, %v1020
        %v1022 = vpop.f32.mrb[0].mxu0
        %v1023 = vpop.f32.mrb[0].mxu0
        %v1024 = vpop.f32.mrb[0].mxu0
        %1025 = vdwg.mxu0
        %v1027 = vsel %vm954, %v978, 0
        %v1030 = vsel %vm982, %v860, 0
        %1032 = vmatprep.subr.bf16.mxu0 0
        %1033 = vmatpush1.bf16.msra.mxu0 %v1030
        %1034 = vmatprep.subr.bf16.mxu0 0
        %1035 = vmatpush1.bf16.msra.mxu0 0
        %1036 = vmatprep.subr.bf16.mxu0 0
        %1037 = vmatpush1.bf16.msra.mxu0 0
        %1038 = vmatprep.subr.bf16.mxu0 0
        %1039 = vmatpush1.bf16.msra.mxu0 0
        %1040 = vmatprep.subr.bf16.mxu0 0
        %1041 = vmatpush1.bf16.msra.mxu0 0
        %1042 = vmatprep.subr.bf16.mxu0 0
        %1043 = vmatpush1.bf16.msra.mxu0 0
        %1044 = vmatprep.subr.bf16.mxu0 0
        %1045 = vmatpush1.bf16.msra.mxu0 0
        %1046 = vmatprep.subr.bf16.mxu0 0
        %1047 = vmatpush1.bf16.msra.mxu0 0
        %1048 = vmatprep.subr.bf16.mxu0 0
        %1049 = vmatpush1.bf16.msra.mxu0 0
        %1050 = vmatprep.subr.bf16.mxu0 0
        %1051 = vmatpush1.bf16.msra.mxu0 0
        %1052 = vmatprep.subr.bf16.mxu0 0
        %1053 = vmatpush1.bf16.msra.mxu0 0
        %1054 = vmatprep.subr.bf16.mxu0 0
        %1055 = vmatpush1.bf16.msra.mxu0 0
        %1056 = vmatprep.subr.bf16.mxu0 0
        %1057 = vmatpush1.bf16.msra.mxu0 0
        %1058 = vmatprep.subr.bf16.mxu0 0
        %1059 = vmatpush1.bf16.msra.mxu0 0
        %1060 = vmatprep.subr.bf16.mxu0 0
        %1061 = vmatpush1.bf16.msra.mxu0 0
        %1062 = vmatprep.subr.bf16.mxu0 0
        %1063 = vmatpush1.bf16.msra.mxu0 0
        %1064 = vmatprep.mubr.bf16.mxu0 0
        %1065 = vmatmul.mubr.bf16.gmra.mrb[0].mxu0 %v1027
        %v1066 = vpop.f32.mrb[0].mxu0
        %v1067 = vadd.f32 0.0, %v1066
        %v1068 = vpop.f32.mrb[0].mxu0
        %v1069 = vpop.f32.mrb[0].mxu0
        %v1070 = vpop.f32.mrb[0].mxu0
        %1071 = vdwg.mxu0
        %v1072 = vpack.c.bf16 %v1067, %v1021
        %1074 = vrot.lane.b32.xlu0 %v855, 96
        %v1075 = vpop.permute.xlu0 %1074
        %1077 = vrot.lane.b32.xlu0 %v857, 96
        %v1078 = vpop.permute.xlu0 %1077
        %v1080 = vsel %vm861, %v1075, 0
        %v1083 = vsel %vm861, %v1078, 0
        %1085 = vmatprep.subr.bf16.mxu0 0
        %1086 = vmatpush1.bf16.xpose.msra.mxu0 %v1083
        %1087 = vmatprep.subr.bf16.mxu0 0
        %1088 = vmatpush1.bf16.xpose.msra.mxu0 0
        %1089 = vmatprep.subr.bf16.mxu0 0
        %1090 = vmatpush1.bf16.xpose.msra.mxu0 0
        %1091 = vmatprep.subr.bf16.mxu0 0
        %1092 = vmatpush1.bf16.xpose.msra.mxu0 0
        %1093 = vmatprep.subr.bf16.mxu0 0
        %1094 = vmatpush1.bf16.xpose.msra.mxu0 0
        %1095 = vmatprep.subr.bf16.mxu0 0
        %1096 = vmatpush1.bf16.xpose.msra.mxu0 0
        %1097 = vmatprep.subr.bf16.mxu0 0
        %1098 = vmatpush1.bf16.xpose.msra.mxu0 0
        %1099 = vmatprep.subr.bf16.mxu0 0
        %1100 = vmatpush1.bf16.xpose.msra.mxu0 0
        %1101 = vmatprep.subr.bf16.mxu0 0
        %1102 = vmatpush1.bf16.xpose.msra.mxu0 0
        %1103 = vmatprep.subr.bf16.mxu0 0
        %1104 = vmatpush1.bf16.xpose.msra.mxu0 0
        %1105 = vmatprep.subr.bf16.mxu0 0
        %1106 = vmatpush1.bf16.xpose.msra.mxu0 0
        %1107 = vmatprep.subr.bf16.mxu0 0
        %1108 = vmatpush1.bf16.xpose.msra.mxu0 0
        %1109 = vmatprep.subr.bf16.mxu0 0
        %1110 = vmatpush1.bf16.xpose.msra.mxu0 0
        %1111 = vmatprep.subr.bf16.mxu0 0
        %1112 = vmatpush1.bf16.xpose.msra.mxu0 0
        %1113 = vmatprep.subr.bf16.mxu0 0
        %1114 = vmatpush1.bf16.xpose.msra.mxu0 0
        %1115 = vmatprep.subr.bf16.mxu0 0
        %1116 = vmatpush1.bf16.xpose.msra.mxu0 0
        %1117 = vmatprep.mubr.bf16.mxu0 0
        %1118 = vmatmul.mubr.bf16.gmra.mrb[0].mxu0 %v1080
        %v1119 = vpop.f32.mrb[0].mxu0
        %v1120 = vadd.f32 0.0, %v1119
        %v1121 = vpop.f32.mrb[0].mxu0
        %v1122 = vpop.f32.mrb[0].mxu0
        %v1123 = vpop.f32.mrb[0].mxu0
        %1124 = vdwg.mxu0
        %1126 = vrot.lane.b32.xlu0 %v856, 96
        %v1127 = vpop.permute.xlu0 %1126
        %1129 = vrot.lane.b32.xlu0 %v858, 96
        %v1130 = vpop.permute.xlu0 %1129
        %v1132 = vsel %vm861, %v1127, 0
        %v1135 = vsel %vm861, %v1130, 0
        %1137 = vmatprep.subr.bf16.mxu0 0
        %1138 = vmatpush1.bf16.xpose.msra.mxu0 %v1135
        %1139 = vmatprep.subr.bf16.mxu0 0
        %1140 = vmatpush1.bf16.xpose.msra.mxu0 0
        %1141 = vmatprep.subr.bf16.mxu0 0
        %1142 = vmatpush1.bf16.xpose.msra.mxu0 0
        %1143 = vmatprep.subr.bf16.mxu0 0
        %1144 = vmatpush1.bf16.xpose.msra.mxu0 0
        %1145 = vmatprep.subr.bf16.mxu0 0
        %1146 = vmatpush1.bf16.xpose.msra.mxu0 0
        %1147 = vmatprep.subr.bf16.mxu0 0
        %1148 = vmatpush1.bf16.xpose.msra.mxu0 0
        %1149 = vmatprep.subr.bf16.mxu0 0
        %1150 = vmatpush1.bf16.xpose.msra.mxu0 0
        %1151 = vmatprep.subr.bf16.mxu0 0
        %1152 = vmatpush1.bf16.xpose.msra.mxu0 0
        %1153 = vmatprep.subr.bf16.mxu0 0
        %1154 = vmatpush1.bf16.xpose.msra.mxu0 0
        %1155 = vmatprep.subr.bf16.mxu0 0
        %1156 = vmatpush1.bf16.xpose.msra.mxu0 0
        %1157 = vmatprep.subr.bf16.mxu0 0
        %1158 = vmatpush1.bf16.xpose.msra.mxu0 0
        %1159 = vmatprep.subr.bf16.mxu0 0
        %1160 = vmatpush1.bf16.xpose.msra.mxu0 0
        %1161 = vmatprep.subr.bf16.mxu0 0
        %1162 = vmatpush1.bf16.xpose.msra.mxu0 0
        %1163 = vmatprep.subr.bf16.mxu0 0
        %1164 = vmatpush1.bf16.xpose.msra.mxu0 0
        %1165 = vmatprep.subr.bf16.mxu0 0
        %1166 = vmatpush1.bf16.xpose.msra.mxu0 0
        %1167 = vmatprep.subr.bf16.mxu0 0
        %1168 = vmatpush1.bf16.xpose.msra.mxu0 0
        %1169 = vmatprep.mubr.bf16.mxu0 0
        %1170 = vmatmul.mubr.bf16.gmra.mrb[0].mxu0 %v1132
        %v1171 = vpop.f32.mrb[0].mxu0
        %v1172 = vadd.f32 0.0, %v1171
        %v1173 = vpop.f32.mrb[0].mxu0
        %v1174 = vpop.f32.mrb[0].mxu0
        %v1175 = vpop.f32.mrb[0].mxu0
        %1176 = vdwg.mxu0
        %v1177 = vsel %vm954, %v1120, -inf
        %1178 = vmax.xlane.f32.xlu0 %v1177
        %v1179 = vpop.xlane.xlu0 %1178
        %v1180 = vsel %vm954, %v1172, -inf
        %1181 = vmax.xlane.f32.xlu0 %v1180
        %v1182 = vpop.xlane.xlu0 %1181
        %v1183 = vsub.f32 %v1120, %v1179
        %v1184 = vsub.f32 %v1172, %v1182
        %v1185 = vmul.f32 %v1183, 1.442695
        %v1186 = vpow.pop %v1185
        %v1187 = vmul.f32 %v1184, 1.442695
        %v1188 = vpow.pop %v1187
        %v1189 = vsel %vm954, %v1186, 0.0
        %1190 = vadd.xlane.f32.xlu0 %v1189
        %v1191 = vpop.xlane.xlu0 %1190
        %v1192 = vsel %vm954, %v1188, 0.0
        %1193 = vadd.xlane.f32.xlu0 %v1192
        %v1194 = vpop.xlane.xlu0 %1193
        %v1195 = vrcp.pop %v1191
        %v1196 = vrcp.pop %v1194
        %v1197 = vmul.f32 %v1186, %v1195
        %v1198 = vmul.f32 %v1188, %v1196
        %v1199 = vpack.c.bf16 %v1197, %v1197
        %v1200 = vpack.c.bf16 %v1198, %v1198
        %1202 = vrot.lane.b32.xlu0 %v859, 96
        %v1203 = vpop.permute.xlu0 %1202
        %v1205 = vsel %vm954, %v1199, 0
        %v1208 = vsel %vm982, %v1203, 0
        %1210 = vmatprep.subr.bf16.mxu0 0
        %1211 = vmatpush1.bf16.msra.mxu0 %v1208
        %1212 = vmatprep.subr.bf16.mxu0 0
        %1213 = vmatpush1.bf16.msra.mxu0 0
        %1214 = vmatprep.subr.bf16.mxu0 0
        %1215 = vmatpush1.bf16.msra.mxu0 0
        %1216 = vmatprep.subr.bf16.mxu0 0
        %1217 = vmatpush1.bf16.msra.mxu0 0
        %1218 = vmatprep.subr.bf16.mxu0 0
        %1219 = vmatpush1.bf16.msra.mxu0 0
        %1220 = vmatprep.subr.bf16.mxu0 0
        %1221 = vmatpush1.bf16.msra.mxu0 0
        %1222 = vmatprep.subr.bf16.mxu0 0
        %1223 = vmatpush1.bf16.msra.mxu0 0
        %1224 = vmatprep.subr.bf16.mxu0 0
        %1225 = vmatpush1.bf16.msra.mxu0 0
        %1226 = vmatprep.subr.bf16.mxu0 0
        %1227 = vmatpush1.bf16.msra.mxu0 0
        %1228 = vmatprep.subr.bf16.mxu0 0
        %1229 = vmatpush1.bf16.msra.mxu0 0
        %1230 = vmatprep.subr.bf16.mxu0 0
        %1231 = vmatpush1.bf16.msra.mxu0 0
        %1232 = vmatprep.subr.bf16.mxu0 0
        %1233 = vmatpush1.bf16.msra.mxu0 0
        %1234 = vmatprep.subr.bf16.mxu0 0
        %1235 = vmatpush1.bf16.msra.mxu0 0
        %1236 = vmatprep.subr.bf16.mxu0 0
        %1237 = vmatpush1.bf16.msra.mxu0 0
        %1238 = vmatprep.subr.bf16.mxu0 0
        %1239 = vmatpush1.bf16.msra.mxu0 0
        %1240 = vmatprep.subr.bf16.mxu0 0
        %1241 = vmatpush1.bf16.msra.mxu0 0
        %1242 = vmatprep.mubr.bf16.mxu0 0
        %1243 = vmatmul.mubr.bf16.gmra.mrb[0].mxu0 %v1205
        %v1244 = vpop.f32.mrb[0].mxu0
        %v1245 = vadd.f32 0.0, %v1244
        %v1246 = vpop.f32.mrb[0].mxu0
        %v1247 = vpop.f32.mrb[0].mxu0
        %v1248 = vpop.f32.mrb[0].mxu0
        %1249 = vdwg.mxu0
        %1251 = vrot.lane.b32.xlu0 %v860, 96
        %v1252 = vpop.permute.xlu0 %1251
        %v1254 = vsel %vm954, %v1200, 0
        %v1257 = vsel %vm982, %v1252, 0
        %1259 = vmatprep.subr.bf16.mxu0 0
        %1260 = vmatpush1.bf16.msra.mxu0 %v1257
        %1261 = vmatprep.subr.bf16.mxu0 0
        %1262 = vmatpush1.bf16.msra.mxu0 0
        %1263 = vmatprep.subr.bf16.mxu0 0
        %1264 = vmatpush1.bf16.msra.mxu0 0
        %1265 = vmatprep.subr.bf16.mxu0 0
        %1266 = vmatpush1.bf16.msra.mxu0 0
        %1267 = vmatprep.subr.bf16.mxu0 0
        %1268 = vmatpush1.bf16.msra.mxu0 0
        %1269 = vmatprep.subr.bf16.mxu0 0
        %1270 = vmatpush1.bf16.msra.mxu0 0
        %1271 = vmatprep.subr.bf16.mxu0 0
        %1272 = vmatpush1.bf16.msra.mxu0 0
        %1273 = vmatprep.subr.bf16.mxu0 0
        %1274 = vmatpush1.bf16.msra.mxu0 0
        %1275 = vmatprep.subr.bf16.mxu0 0
        %1276 = vmatpush1.bf16.msra.mxu0 0
        %1277 = vmatprep.subr.bf16.mxu0 0
        %1278 = vmatpush1.bf16.msra.mxu0 0
        %1279 = vmatprep.subr.bf16.mxu0 0
        %1280 = vmatpush1.bf16.msra.mxu0 0
        %1281 = vmatprep.subr.bf16.mxu0 0
        %1282 = vmatpush1.bf16.msra.mxu0 0
        %1283 = vmatprep.subr.bf16.mxu0 0
        %1284 = vmatpush1.bf16.msra.mxu0 0
        %1285 = vmatprep.subr.bf16.mxu0 0
        %1286 = vmatpush1.bf16.msra.mxu0 0
        %1287 = vmatprep.subr.bf16.mxu0 0
        %1288 = vmatpush1.bf16.msra.mxu0 0
        %1289 = vmatprep.subr.bf16.mxu0 0
        %1290 = vmatpush1.bf16.msra.mxu0 0
        %1291 = vmatprep.mubr.bf16.mxu0 0
        %1292 = vmatmul.mubr.bf16.gmra.mrb[0].mxu0 %v1254
        %v1293 = vpop.f32.mrb[0].mxu0
        %v1294 = vadd.f32 0.0, %v1293
        %v1295 = vpop.f32.mrb[0].mxu0
        %v1296 = vpop.f32.mrb[0].mxu0
        %v1297 = vpop.f32.mrb[0].mxu0
        %1298 = vdwg.mxu0
        %v1299 = vpack.c.bf16 %v1294, %v1245
        %v1304 = vunpack.c.l.b16 %v843
        %v1305 = vunpack.c.l.b16 %v844
        %v1306 = vunpack.c.l.b16 %v845
        %v1307 = vunpack.c.l.b16 %v846
        %v1308 = vpack.c.b16 %v1305, %v1304
        %v1309 = vpack.c.b16 %v1307, %v1306
        %v1313 = vsel %vm861, %v1299, 0
        %1315 = vmatprep.subr.bf16.mxu0 0
        %1316 = vmatpush1.bf16.msra.mxu0 %v1308
        %1317 = vmatprep.subr.bf16.mxu0 0
        %1318 = vmatpush1.bf16.msra.mxu0 %v1309
        %1319 = vmatprep.subr.bf16.mxu0 0
        %1320 = vmatpush1.bf16.msra.mxu0 0
        %1321 = vmatprep.subr.bf16.mxu0 0
        %1322 = vmatpush1.bf16.msra.mxu0 0
        %1323 = vmatprep.subr.bf16.mxu0 0
        %1324 = vmatpush1.bf16.msra.mxu0 0
        %1325 = vmatprep.subr.bf16.mxu0 0
        %1326 = vmatpush1.bf16.msra.mxu0 0
        %1327 = vmatprep.subr.bf16.mxu0 0
        %1328 = vmatpush1.bf16.msra.mxu0 0
        %1329 = vmatprep.subr.bf16.mxu0 0
        %1330 = vmatpush1.bf16.msra.mxu0 0
        %1331 = vmatprep.subr.bf16.mxu0 0
        %1332 = vmatpush1.bf16.msra.mxu0 0
        %1333 = vmatprep.subr.bf16.mxu0 0
        %1334 = vmatpush1.bf16.msra.mxu0 0
        %1335 = vmatprep.subr.bf16.mxu0 0
        %1336 = vmatpush1.bf16.msra.mxu0 0
        %1337 = vmatprep.subr.bf16.mxu0 0
        %1338 = vmatpush1.bf16.msra.mxu0 0
        %1339 = vmatprep.subr.bf16.mxu0 0
        %1340 = vmatpush1.bf16.msra.mxu0 0
        %1341 = vmatprep.subr.bf16.mxu0 0
        %1342 = vmatpush1.bf16.msra.mxu0 0
        %1343 = vmatprep.subr.bf16.mxu0 0
        %1344 = vmatpush1.bf16.msra.mxu0 0
        %1345 = vmatprep.subr.bf16.mxu0 0
        %1346 = vmatpush1.bf16.msra.mxu0 0
        %1347 = vmatprep.mubr.bf16.mxu0 0
        %1348 = vmatmul.mubr.bf16.gmra.mrb[0].mxu0 %v1313
        %v1349 = vpop.f32.mrb[0].mxu0
        %v1350 = vadd.f32 0.0, %v1349
        %v1351 = vpop.f32.mrb[0].mxu0
        %v1352 = vpop.f32.mrb[0].mxu0
        %v1353 = vadd.f32 0.0, %v1352
        %v1354 = vpop.f32.mrb[0].mxu0
        %1355 = vdwg.mxu0
        %v1360 = vunpack.c.l.b16 %v839
        %v1361 = vunpack.c.l.b16 %v840
        %v1362 = vunpack.c.l.b16 %v841
        %v1363 = vunpack.c.l.b16 %v842
        %v1364 = vpack.c.b16 %v1361, %v1360
        %v1365 = vpack.c.b16 %v1363, %v1362
        %v1369 = vsel %vm861, %v1072, 0
        %1371 = vmatprep.subr.bf16.mxu0 0
        %1372 = vmatpush1.bf16.msra.mxu0 %v1364
        %1373 = vmatprep.subr.bf16.mxu0 0
        %1374 = vmatpush1.bf16.msra.mxu0 %v1365
        %1375 = vmatprep.subr.bf16.mxu0 0
        %1376 = vmatpush1.bf16.msra.mxu0 0
        %1377 = vmatprep.subr.bf16.mxu0 0
        %1378 = vmatpush1.bf16.msra.mxu0 0
        %1379 = vmatprep.subr.bf16.mxu0 0
        %1380 = vmatpush1.bf16.msra.mxu0 0
        %1381 = vmatprep.subr.bf16.mxu0 0
        %1382 = vmatpush1.bf16.msra.mxu0 0
        %1383 = vmatprep.subr.bf16.mxu0 0
        %1384 = vmatpush1.bf16.msra.mxu0 0
        %1385 = vmatprep.subr.bf16.mxu0 0
        %1386 = vmatpush1.bf16.msra.mxu0 0
        %1387 = vmatprep.subr.bf16.mxu0 0
        %1388 = vmatpush1.bf16.msra.mxu0 0
        %1389 = vmatprep.subr.bf16.mxu0 0
        %1390 = vmatpush1.bf16.msra.mxu0 0
        %1391 = vmatprep.subr.bf16.mxu0 0
        %1392 = vmatpush1.bf16.msra.mxu0 0
        %1393 = vmatprep.subr.bf16.mxu0 0
        %1394 = vmatpush1.bf16.msra.mxu0 0
        %1395 = vmatprep.subr.bf16.mxu0 0
        %1396 = vmatpush1.bf16.msra.mxu0 0
        %1397 = vmatprep.subr.bf16.mxu0 0
        %1398 = vmatpush1.bf16.msra.mxu0 0
        %1399 = vmatprep.subr.bf16.mxu0 0
        %1400 = vmatpush1.bf16.msra.mxu0 0
        %1401 = vmatprep.subr.bf16.mxu0 0
        %1402 = vmatpush1.bf16.msra.mxu0 0
        %1403 = vmatprep.mubr.bf16.mxu0 0
        %1404 = vmatmul.mubr.bf16.gmra.mrb[0].mxu0 %v1369
        %v1405 = vpop.f32.mrb[0].mxu0
        %v1406 = vadd.f32 %v1350, %v1405
        %v1407 = vpop.f32.mrb[0].mxu0
        %v1408 = vpop.f32.mrb[0].mxu0
        %v1409 = vadd.f32 %v1353, %v1408
        %v1410 = vpop.f32.mrb[0].mxu0
        %1411 = vdwg.mxu0
        %1412 = vrot.lane.b32.xlu0 %v855, 64
        %v1413 = vpop.permute.xlu0 %1412
        %1414 = vrot.lane.b32.xlu0 %v857, 64
        %v1415 = vpop.permute.xlu0 %1414
        %v1417 = vsel %vm861, %v1413, 0
        %v1420 = vsel %vm861, %v1415, 0
        %1422 = vmatprep.subr.bf16.mxu0 0
        %1423 = vmatpush1.bf16.xpose.msra.mxu0 %v1420
        %1424 = vmatprep.subr.bf16.mxu0 0
        %1425 = vmatpush1.bf16.xpose.msra.mxu0 0
        %1426 = vmatprep.subr.bf16.mxu0 0
        %1427 = vmatpush1.bf16.xpose.msra.mxu0 0
        %1428 = vmatprep.subr.bf16.mxu0 0
        %1429 = vmatpush1.bf16.xpose.msra.mxu0 0
        %1430 = vmatprep.subr.bf16.mxu0 0
        %1431 = vmatpush1.bf16.xpose.msra.mxu0 0
        %1432 = vmatprep.subr.bf16.mxu0 0
        %1433 = vmatpush1.bf16.xpose.msra.mxu0 0
        %1434 = vmatprep.subr.bf16.mxu0 0
        %1435 = vmatpush1.bf16.xpose.msra.mxu0 0
        %1436 = vmatprep.subr.bf16.mxu0 0
        %1437 = vmatpush1.bf16.xpose.msra.mxu0 0
        %1438 = vmatprep.subr.bf16.mxu0 0
        %1439 = vmatpush1.bf16.xpose.msra.mxu0 0
        %1440 = vmatprep.subr.bf16.mxu0 0
        %1441 = vmatpush1.bf16.xpose.msra.mxu0 0
        %1442 = vmatprep.subr.bf16.mxu0 0
        %1443 = vmatpush1.bf16.xpose.msra.mxu0 0
        %1444 = vmatprep.subr.bf16.mxu0 0
        %1445 = vmatpush1.bf16.xpose.msra.mxu0 0
        %1446 = vmatprep.subr.bf16.mxu0 0
        %1447 = vmatpush1.bf16.xpose.msra.mxu0 0
        %1448 = vmatprep.subr.bf16.mxu0 0
        %1449 = vmatpush1.bf16.xpose.msra.mxu0 0
        %1450 = vmatprep.subr.bf16.mxu0 0
        %1451 = vmatpush1.bf16.xpose.msra.mxu0 0
        %1452 = vmatprep.subr.bf16.mxu0 0
        %1453 = vmatpush1.bf16.xpose.msra.mxu0 0
        %1454 = vmatprep.mubr.bf16.mxu0 0
        %1455 = vmatmul.mubr.bf16.gmra.mrb[0].mxu0 %v1417
        %v1456 = vpop.f32.mrb[0].mxu0
        %v1457 = vadd.f32 0.0, %v1456
        %v1458 = vpop.f32.mrb[0].mxu0
        %v1459 = vpop.f32.mrb[0].mxu0
        %v1460 = vpop.f32.mrb[0].mxu0
        %1461 = vdwg.mxu0
        %1462 = vrot.lane.b32.xlu0 %v856, 64
        %v1463 = vpop.permute.xlu0 %1462
        %1464 = vrot.lane.b32.xlu0 %v858, 64
        %v1465 = vpop.permute.xlu0 %1464
        %v1467 = vsel %vm861, %v1463, 0
        %v1470 = vsel %vm861, %v1465, 0
        %1472 = vmatprep.subr.bf16.mxu0 0
        %1473 = vmatpush1.bf16.xpose.msra.mxu0 %v1470
        %1474 = vmatprep.subr.bf16.mxu0 0
        %1475 = vmatpush1.bf16.xpose.msra.mxu0 0
        %1476 = vmatprep.subr.bf16.mxu0 0
        %1477 = vmatpush1.bf16.xpose.msra.mxu0 0
        %1478 = vmatprep.subr.bf16.mxu0 0
        %1479 = vmatpush1.bf16.xpose.msra.mxu0 0
        %1480 = vmatprep.subr.bf16.mxu0 0
        %1481 = vmatpush1.bf16.xpose.msra.mxu0 0
        %1482 = vmatprep.subr.bf16.mxu0 0
        %1483 = vmatpush1.bf16.xpose.msra.mxu0 0
        %1484 = vmatprep.subr.bf16.mxu0 0
        %1485 = vmatpush1.bf16.xpose.msra.mxu0 0
        %1486 = vmatprep.subr.bf16.mxu0 0
        %1487 = vmatpush1.bf16.xpose.msra.mxu0 0
        %1488 = vmatprep.subr.bf16.mxu0 0
        %1489 = vmatpush1.bf16.xpose.msra.mxu0 0
        %1490 = vmatprep.subr.bf16.mxu0 0
        %1491 = vmatpush1.bf16.xpose.msra.mxu0 0
        %1492 = vmatprep.subr.bf16.mxu0 0
        %1493 = vmatpush1.bf16.xpose.msra.mxu0 0
        %1494 = vmatprep.subr.bf16.mxu0 0
        %1495 = vmatpush1.bf16.xpose.msra.mxu0 0
        %1496 = vmatprep.subr.bf16.mxu0 0
        %1497 = vmatpush1.bf16.xpose.msra.mxu0 0
        %1498 = vmatprep.subr.bf16.mxu0 0
        %1499 = vmatpush1.bf16.xpose.msra.mxu0 0
        %1500 = vmatprep.subr.bf16.mxu0 0
        %1501 = vmatpush1.bf16.xpose.msra.mxu0 0
        %1502 = vmatprep.subr.bf16.mxu0 0
        %1503 = vmatpush1.bf16.xpose.msra.mxu0 0
        %1504 = vmatprep.mubr.bf16.mxu0 0
        %1505 = vmatmul.mubr.bf16.gmra.mrb[0].mxu0 %v1467
        %v1506 = vpop.f32.mrb[0].mxu0
        %v1507 = vadd.f32 0.0, %v1506
        %v1508 = vpop.f32.mrb[0].mxu0
        %v1509 = vpop.f32.mrb[0].mxu0
        %v1510 = vpop.f32.mrb[0].mxu0
        %1511 = vdwg.mxu0
        %v1512 = vsel %vm954, %v1457, -inf
        %1513 = vmax.xlane.f32.xlu0 %v1512
        %v1514 = vpop.xlane.xlu0 %1513
        %v1515 = vsel %vm954, %v1507, -inf
        %1516 = vmax.xlane.f32.xlu0 %v1515
        %v1517 = vpop.xlane.xlu0 %1516
        %v1518 = vsub.f32 %v1457, %v1514
        %v1519 = vsub.f32 %v1507, %v1517
        %v1520 = vmul.f32 %v1518, 1.442695
        %v1521 = vpow.pop %v1520
        %v1522 = vmul.f32 %v1519, 1.442695
        %v1523 = vpow.pop %v1522
        %v1524 = vsel %vm954, %v1521, 0.0
        %1525 = vadd.xlane.f32.xlu0 %v1524
        %v1526 = vpop.xlane.xlu0 %1525
        %v1527 = vsel %vm954, %v1523, 0.0
        %1528 = vadd.xlane.f32.xlu0 %v1527
        %v1529 = vpop.xlane.xlu0 %1528
        %v1530 = vrcp.pop %v1526
        %v1531 = vrcp.pop %v1529
        %v1532 = vmul.f32 %v1521, %v1530
        %v1533 = vmul.f32 %v1523, %v1531
        %v1534 = vpack.c.bf16 %v1532, %v1532
        %v1535 = vpack.c.bf16 %v1533, %v1533
        %1536 = vrot.lane.b32.xlu0 %v859, 64
        %v1537 = vpop.permute.xlu0 %1536
        %v1539 = vsel %vm954, %v1534, 0
        %v1542 = vsel %vm982, %v1537, 0
        %1544 = vmatprep.subr.bf16.mxu0 0
        %1545 = vmatpush1.bf16.msra.mxu0 %v1542
        %1546 = vmatprep.subr.bf16.mxu0 0
        %1547 = vmatpush1.bf16.msra.mxu0 0
        %1548 = vmatprep.subr.bf16.mxu0 0
        %1549 = vmatpush1.bf16.msra.mxu0 0
        %1550 = vmatprep.subr.bf16.mxu0 0
        %1551 = vmatpush1.bf16.msra.mxu0 0
        %1552 = vmatprep.subr.bf16.mxu0 0
        %1553 = vmatpush1.bf16.msra.mxu0 0
        %1554 = vmatprep.subr.bf16.mxu0 0
        %1555 = vmatpush1.bf16.msra.mxu0 0
        %1556 = vmatprep.subr.bf16.mxu0 0
        %1557 = vmatpush1.bf16.msra.mxu0 0
        %1558 = vmatprep.subr.bf16.mxu0 0
        %1559 = vmatpush1.bf16.msra.mxu0 0
        %1560 = vmatprep.subr.bf16.mxu0 0
        %1561 = vmatpush1.bf16.msra.mxu0 0
        %1562 = vmatprep.subr.bf16.mxu0 0
        %1563 = vmatpush1.bf16.msra.mxu0 0
        %1564 = vmatprep.subr.bf16.mxu0 0
        %1565 = vmatpush1.bf16.msra.mxu0 0
        %1566 = vmatprep.subr.bf16.mxu0 0
        %1567 = vmatpush1.bf16.msra.mxu0 0
        %1568 = vmatprep.subr.bf16.mxu0 0
        %1569 = vmatpush1.bf16.msra.mxu0 0
        %1570 = vmatprep.subr.bf16.mxu0 0
        %1571 = vmatpush1.bf16.msra.mxu0 0
        %1572 = vmatprep.subr.bf16.mxu0 0
        %1573 = vmatpush1.bf16.msra.mxu0 0
        %1574 = vmatprep.subr.bf16.mxu0 0
        %1575 = vmatpush1.bf16.msra.mxu0 0
        %1576 = vmatprep.mubr.bf16.mxu0 0
        %1577 = vmatmul.mubr.bf16.gmra.mrb[0].mxu0 %v1539
        %v1578 = vpop.f32.mrb[0].mxu0
        %v1579 = vadd.f32 0.0, %v1578
        %v1580 = vpop.f32.mrb[0].mxu0
        %v1581 = vpop.f32.mrb[0].mxu0
        %v1582 = vpop.f32.mrb[0].mxu0
        %1583 = vdwg.mxu0
        %1584 = vrot.lane.b32.xlu0 %v860, 64
        %v1585 = vpop.permute.xlu0 %1584
        %v1587 = vsel %vm954, %v1535, 0
        %v1590 = vsel %vm982, %v1585, 0
        %1592 = vmatprep.subr.bf16.mxu0 0
        %1593 = vmatpush1.bf16.msra.mxu0 %v1590
        %1594 = vmatprep.subr.bf16.mxu0 0
        %1595 = vmatpush1.bf16.msra.mxu0 0
        %1596 = vmatprep.subr.bf16.mxu0 0
        %1597 = vmatpush1.bf16.msra.mxu0 0
        %1598 = vmatprep.subr.bf16.mxu0 0
        %1599 = vmatpush1.bf16.msra.mxu0 0
        %1600 = vmatprep.subr.bf16.mxu0 0
        %1601 = vmatpush1.bf16.msra.mxu0 0
        %1602 = vmatprep.subr.bf16.mxu0 0
        %1603 = vmatpush1.bf16.msra.mxu0 0
        %1604 = vmatprep.subr.bf16.mxu0 0
        %1605 = vmatpush1.bf16.msra.mxu0 0
        %1606 = vmatprep.subr.bf16.mxu0 0
        %1607 = vmatpush1.bf16.msra.mxu0 0
        %1608 = vmatprep.subr.bf16.mxu0 0
        %1609 = vmatpush1.bf16.msra.mxu0 0
        %1610 = vmatprep.subr.bf16.mxu0 0
        %1611 = vmatpush1.bf16.msra.mxu0 0
        %1612 = vmatprep.subr.bf16.mxu0 0
        %1613 = vmatpush1.bf16.msra.mxu0 0
        %1614 = vmatprep.subr.bf16.mxu0 0
        %1615 = vmatpush1.bf16.msra.mxu0 0
        %1616 = vmatprep.subr.bf16.mxu0 0
        %1617 = vmatpush1.bf16.msra.mxu0 0
        %1618 = vmatprep.subr.bf16.mxu0 0
        %1619 = vmatpush1.bf16.msra.mxu0 0
        %1620 = vmatprep.subr.bf16.mxu0 0
        %1621 = vmatpush1.bf16.msra.mxu0 0
        %1622 = vmatprep.subr.bf16.mxu0 0
        %1623 = vmatpush1.bf16.msra.mxu0 0
        %1624 = vmatprep.mubr.bf16.mxu0 0
        %1625 = vmatmul.mubr.bf16.gmra.mrb[0].mxu0 %v1587
        %v1626 = vpop.f32.mrb[0].mxu0
        %v1627 = vadd.f32 0.0, %v1626
        %v1628 = vpop.f32.mrb[0].mxu0
        %v1629 = vpop.f32.mrb[0].mxu0
        %v1630 = vpop.f32.mrb[0].mxu0
        %1631 = vdwg.mxu0
        %v1632 = vpack.c.bf16 %v1627, %v1579
        %v1637 = vunpack.c.l.b16 %v847
        %v1638 = vunpack.c.l.b16 %v848
        %v1639 = vunpack.c.l.b16 %v849
        %v1640 = vunpack.c.l.b16 %v850
        %v1641 = vpack.c.b16 %v1638, %v1637
        %v1642 = vpack.c.b16 %v1640, %v1639
        %v1646 = vsel %vm861, %v1632, 0
        %1648 = vmatprep.subr.bf16.mxu0 0
        %1649 = vmatpush1.bf16.msra.mxu0 %v1641
        %1650 = vmatprep.subr.bf16.mxu0 0
        %1651 = vmatpush1.bf16.msra.mxu0 %v1642
        %1652 = vmatprep.subr.bf16.mxu0 0
        %1653 = vmatpush1.bf16.msra.mxu0 0
        %1654 = vmatprep.subr.bf16.mxu0 0
        %1655 = vmatpush1.bf16.msra.mxu0 0
        %1656 = vmatprep.subr.bf16.mxu0 0
        %1657 = vmatpush1.bf16.msra.mxu0 0
        %1658 = vmatprep.subr.bf16.mxu0 0
        %1659 = vmatpush1.bf16.msra.mxu0 0
        %1660 = vmatprep.subr.bf16.mxu0 0
        %1661 = vmatpush1.bf16.msra.mxu0 0
        %1662 = vmatprep.subr.bf16.mxu0 0
        %1663 = vmatpush1.bf16.msra.mxu0 0
        %1664 = vmatprep.subr.bf16.mxu0 0
        %1665 = vmatpush1.bf16.msra.mxu0 0
        %1666 = vmatprep.subr.bf16.mxu0 0
        %1667 = vmatpush1.bf16.msra.mxu0 0
        %1668 = vmatprep.subr.bf16.mxu0 0
        %1669 = vmatpush1.bf16.msra.mxu0 0
        %1670 = vmatprep.subr.bf16.mxu0 0
        %1671 = vmatpush1.bf16.msra.mxu0 0
        %1672 = vmatprep.subr.bf16.mxu0 0
        %1673 = vmatpush1.bf16.msra.mxu0 0
        %1674 = vmatprep.subr.bf16.mxu0 0
        %1675 = vmatpush1.bf16.msra.mxu0 0
        %1676 = vmatprep.subr.bf16.mxu0 0
        %1677 = vmatpush1.bf16.msra.mxu0 0
        %1678 = vmatprep.subr.bf16.mxu0 0
        %1679 = vmatpush1.bf16.msra.mxu0 0
        %1680 = vmatprep.mubr.bf16.mxu0 0
        %1681 = vmatmul.mubr.bf16.gmra.mrb[0].mxu0 %v1646
        %v1682 = vpop.f32.mrb[0].mxu0
        %v1683 = vadd.f32 0.0, %v1682
        %v1684 = vpop.f32.mrb[0].mxu0
        %v1685 = vpop.f32.mrb[0].mxu0
        %v1686 = vadd.f32 0.0, %v1685
        %v1687 = vpop.f32.mrb[0].mxu0
        %1688 = vdwg.mxu0
        %v1689 = vadd.f32 %v1406, %v1683
        %v1690 = vadd.f32 %v1409, %v1686
        %1691 = vrot.lane.b32.xlu0 %v855, 32
        %v1692 = vpop.permute.xlu0 %1691
        %1693 = vrot.lane.b32.xlu0 %v857, 32
        %v1694 = vpop.permute.xlu0 %1693
        %v1696 = vsel %vm861, %v1692, 0
        %v1699 = vsel %vm861, %v1694, 0
        %1701 = vmatprep.subr.bf16.mxu0 0
        %1702 = vmatpush1.bf16.xpose.msra.mxu0 %v1699
        %1703 = vmatprep.subr.bf16.mxu0 0
        %1704 = vmatpush1.bf16.xpose.msra.mxu0 0
        %1705 = vmatprep.subr.bf16.mxu0 0
        %1706 = vmatpush1.bf16.xpose.msra.mxu0 0
        %1707 = vmatprep.subr.bf16.mxu0 0
        %1708 = vmatpush1.bf16.xpose.msra.mxu0 0
        %1709 = vmatprep.subr.bf16.mxu0 0
        %1710 = vmatpush1.bf16.xpose.msra.mxu0 0
        %1711 = vmatprep.subr.bf16.mxu0 0
        %1712 = vmatpush1.bf16.xpose.msra.mxu0 0
        %1713 = vmatprep.subr.bf16.mxu0 0
        %1714 = vmatpush1.bf16.xpose.msra.mxu0 0
        %1715 = vmatprep.subr.bf16.mxu0 0
        %1716 = vmatpush1.bf16.xpose.msra.mxu0 0
        %1717 = vmatprep.subr.bf16.mxu0 0
        %1718 = vmatpush1.bf16.xpose.msra.mxu0 0
        %1719 = vmatprep.subr.bf16.mxu0 0
        %1720 = vmatpush1.bf16.xpose.msra.mxu0 0
        %1721 = vmatprep.subr.bf16.mxu0 0
        %1722 = vmatpush1.bf16.xpose.msra.mxu0 0
        %1723 = vmatprep.subr.bf16.mxu0 0
        %1724 = vmatpush1.bf16.xpose.msra.mxu0 0
        %1725 = vmatprep.subr.bf16.mxu0 0
        %1726 = vmatpush1.bf16.xpose.msra.mxu0 0
        %1727 = vmatprep.subr.bf16.mxu0 0
        %1728 = vmatpush1.bf16.xpose.msra.mxu0 0
        %1729 = vmatprep.subr.bf16.mxu0 0
        %1730 = vmatpush1.bf16.xpose.msra.mxu0 0
        %1731 = vmatprep.subr.bf16.mxu0 0
        %1732 = vmatpush1.bf16.xpose.msra.mxu0 0
        %1733 = vmatprep.mubr.bf16.mxu0 0
        %1734 = vmatmul.mubr.bf16.gmra.mrb[0].mxu0 %v1696
        %v1735 = vpop.f32.mrb[0].mxu0
        %v1736 = vadd.f32 0.0, %v1735
        %v1737 = vpop.f32.mrb[0].mxu0
        %v1738 = vpop.f32.mrb[0].mxu0
        %v1739 = vpop.f32.mrb[0].mxu0
        %1740 = vdwg.mxu0
        %1741 = vrot.lane.b32.xlu0 %v856, 32
        %v1742 = vpop.permute.xlu0 %1741
        %1743 = vrot.lane.b32.xlu0 %v858, 32
        %v1744 = vpop.permute.xlu0 %1743
        %v1746 = vsel %vm861, %v1742, 0
        %v1749 = vsel %vm861, %v1744, 0
        %1751 = vmatprep.subr.bf16.mxu0 0
        %1752 = vmatpush1.bf16.xpose.msra.mxu0 %v1749
        %1753 = vmatprep.subr.bf16.mxu0 0
        %1754 = vmatpush1.bf16.xpose.msra.mxu0 0
        %1755 = vmatprep.subr.bf16.mxu0 0
        %1756 = vmatpush1.bf16.xpose.msra.mxu0 0
        %1757 = vmatprep.subr.bf16.mxu0 0
        %1758 = vmatpush1.bf16.xpose.msra.mxu0 0
        %1759 = vmatprep.subr.bf16.mxu0 0
        %1760 = vmatpush1.bf16.xpose.msra.mxu0 0
        %1761 = vmatprep.subr.bf16.mxu0 0
        %1762 = vmatpush1.bf16.xpose.msra.mxu0 0
        %1763 = vmatprep.subr.bf16.mxu0 0
        %1764 = vmatpush1.bf16.xpose.msra.mxu0 0
        %1765 = vmatprep.subr.bf16.mxu0 0
        %1766 = vmatpush1.bf16.xpose.msra.mxu0 0
        %1767 = vmatprep.subr.bf16.mxu0 0
        %1768 = vmatpush1.bf16.xpose.msra.mxu0 0
        %1769 = vmatprep.subr.bf16.mxu0 0
        %1770 = vmatpush1.bf16.xpose.msra.mxu0 0
        %1771 = vmatprep.subr.bf16.mxu0 0
        %1772 = vmatpush1.bf16.xpose.msra.mxu0 0
        %1773 = vmatprep.subr.bf16.mxu0 0
        %1774 = vmatpush1.bf16.xpose.msra.mxu0 0
        %1775 = vmatprep.subr.bf16.mxu0 0
        %1776 = vmatpush1.bf16.xpose.msra.mxu0 0
        %1777 = vmatprep.subr.bf16.mxu0 0
        %1778 = vmatpush1.bf16.xpose.msra.mxu0 0
        %1779 = vmatprep.subr.bf16.mxu0 0
        %1780 = vmatpush1.bf16.xpose.msra.mxu0 0
        %1781 = vmatprep.subr.bf16.mxu0 0
        %1782 = vmatpush1.bf16.xpose.msra.mxu0 0
        %1783 = vmatprep.mubr.bf16.mxu0 0
        %1784 = vmatmul.mubr.bf16.gmra.mrb[0].mxu0 %v1746
        %v1785 = vpop.f32.mrb[0].mxu0
        %v1786 = vadd.f32 0.0, %v1785
        %v1787 = vpop.f32.mrb[0].mxu0
        %v1788 = vpop.f32.mrb[0].mxu0
        %v1789 = vpop.f32.mrb[0].mxu0
        %1790 = vdwg.mxu0
        %v1791 = vsel %vm954, %v1736, -inf
        %1792 = vmax.xlane.f32.xlu0 %v1791
        %v1793 = vpop.xlane.xlu0 %1792
        %v1794 = vsel %vm954, %v1786, -inf
        %1795 = vmax.xlane.f32.xlu0 %v1794
        %v1796 = vpop.xlane.xlu0 %1795
        %v1797 = vsub.f32 %v1736, %v1793
        %v1798 = vsub.f32 %v1786, %v1796
        %v1799 = vmul.f32 %v1797, 1.442695
        %v1800 = vpow.pop %v1799
        %v1801 = vmul.f32 %v1798, 1.442695
        %v1802 = vpow.pop %v1801
        %v1803 = vsel %vm954, %v1800, 0.0
        %1804 = vadd.xlane.f32.xlu0 %v1803
        %v1805 = vpop.xlane.xlu0 %1804
        %v1806 = vsel %vm954, %v1802, 0.0
        %1807 = vadd.xlane.f32.xlu0 %v1806
        %v1808 = vpop.xlane.xlu0 %1807
        %v1809 = vrcp.pop %v1805
        %v1810 = vrcp.pop %v1808
        %v1811 = vmul.f32 %v1800, %v1809
        %v1812 = vmul.f32 %v1802, %v1810
        %v1813 = vpack.c.bf16 %v1811, %v1811
        %v1814 = vpack.c.bf16 %v1812, %v1812
        %1815 = vrot.lane.b32.xlu0 %v859, 32
        %v1816 = vpop.permute.xlu0 %1815
        %v1818 = vsel %vm954, %v1813, 0
        %v1821 = vsel %vm982, %v1816, 0
        %1823 = vmatprep.subr.bf16.mxu0 0
        %1824 = vmatpush1.bf16.msra.mxu0 %v1821
        %1825 = vmatprep.subr.bf16.mxu0 0
        %1826 = vmatpush1.bf16.msra.mxu0 0
        %1827 = vmatprep.subr.bf16.mxu0 0
        %1828 = vmatpush1.bf16.msra.mxu0 0
        %1829 = vmatprep.subr.bf16.mxu0 0
        %1830 = vmatpush1.bf16.msra.mxu0 0
        %1831 = vmatprep.subr.bf16.mxu0 0
        %1832 = vmatpush1.bf16.msra.mxu0 0
        %1833 = vmatprep.subr.bf16.mxu0 0
        %1834 = vmatpush1.bf16.msra.mxu0 0
        %1835 = vmatprep.subr.bf16.mxu0 0
        %1836 = vmatpush1.bf16.msra.mxu0 0
        %1837 = vmatprep.subr.bf16.mxu0 0
        %1838 = vmatpush1.bf16.msra.mxu0 0
        %1839 = vmatprep.subr.bf16.mxu0 0
        %1840 = vmatpush1.bf16.msra.mxu0 0
        %1841 = vmatprep.subr.bf16.mxu0 0
        %1842 = vmatpush1.bf16.msra.mxu0 0
        %1843 = vmatprep.subr.bf16.mxu0 0
        %1844 = vmatpush1.bf16.msra.mxu0 0
        %1845 = vmatprep.subr.bf16.mxu0 0
        %1846 = vmatpush1.bf16.msra.mxu0 0
        %1847 = vmatprep.subr.bf16.mxu0 0
        %1848 = vmatpush1.bf16.msra.mxu0 0
        %1849 = vmatprep.subr.bf16.mxu0 0
        %1850 = vmatpush1.bf16.msra.mxu0 0
        %1851 = vmatprep.subr.bf16.mxu0 0
        %1852 = vmatpush1.bf16.msra.mxu0 0
        %1853 = vmatprep.subr.bf16.mxu0 0
        %1854 = vmatpush1.bf16.msra.mxu0 0
        %1855 = vmatprep.mubr.bf16.mxu0 0
        %1856 = vmatmul.mubr.bf16.gmra.mrb[0].mxu0 %v1818
        %v1857 = vpop.f32.mrb[0].mxu0
        %v1858 = vadd.f32 0.0, %v1857
        %v1859 = vpop.f32.mrb[0].mxu0
        %v1860 = vpop.f32.mrb[0].mxu0
        %v1861 = vpop.f32.mrb[0].mxu0
        %1862 = vdwg.mxu0
        %1863 = vrot.lane.b32.xlu0 %v860, 32
        %v1864 = vpop.permute.xlu0 %1863
        %v1866 = vsel %vm954, %v1814, 0
        %v1869 = vsel %vm982, %v1864, 0
        %1871 = vmatprep.subr.bf16.mxu0 0
        %1872 = vmatpush1.bf16.msra.mxu0 %v1869
        %1873 = vmatprep.subr.bf16.mxu0 0
        %1874 = vmatpush1.bf16.msra.mxu0 0
        %1875 = vmatprep.subr.bf16.mxu0 0
        %1876 = vmatpush1.bf16.msra.mxu0 0
        %1877 = vmatprep.subr.bf16.mxu0 0
        %1878 = vmatpush1.bf16.msra.mxu0 0
        %1879 = vmatprep.subr.bf16.mxu0 0
        %1880 = vmatpush1.bf16.msra.mxu0 0
        %1881 = vmatprep.subr.bf16.mxu0 0
        %1882 = vmatpush1.bf16.msra.mxu0 0
        %1883 = vmatprep.subr.bf16.mxu0 0
        %1884 = vmatpush1.bf16.msra.mxu0 0
        %1885 = vmatprep.subr.bf16.mxu0 0
        %1886 = vmatpush1.bf16.msra.mxu0 0
        %1887 = vmatprep.subr.bf16.mxu0 0
        %1888 = vmatpush1.bf16.msra.mxu0 0
        %1889 = vmatprep.subr.bf16.mxu0 0
        %1890 = vmatpush1.bf16.msra.mxu0 0
        %1891 = vmatprep.subr.bf16.mxu0 0
        %1892 = vmatpush1.bf16.msra.mxu0 0
        %1893 = vmatprep.subr.bf16.mxu0 0
        %1894 = vmatpush1.bf16.msra.mxu0 0
        %1895 = vmatprep.subr.bf16.mxu0 0
        %1896 = vmatpush1.bf16.msra.mxu0 0
        %1897 = vmatprep.subr.bf16.mxu0 0
        %1898 = vmatpush1.bf16.msra.mxu0 0
        %1899 = vmatprep.subr.bf16.mxu0 0
        %1900 = vmatpush1.bf16.msra.mxu0 0
        %1901 = vmatprep.subr.bf16.mxu0 0
        %1902 = vmatpush1.bf16.msra.mxu0 0
        %1903 = vmatprep.mubr.bf16.mxu0 0
        %1904 = vmatmul.mubr.bf16.gmra.mrb[0].mxu0 %v1866
        %v1905 = vpop.f32.mrb[0].mxu0
        %v1906 = vadd.f32 0.0, %v1905
        %v1907 = vpop.f32.mrb[0].mxu0
        %v1908 = vpop.f32.mrb[0].mxu0
        %v1909 = vpop.f32.mrb[0].mxu0
        %1910 = vdwg.mxu0
        %v1911 = vpack.c.bf16 %v1906, %v1858
        %v1916 = vunpack.c.l.b16 %v851
        %v1917 = vunpack.c.l.b16 %v852
        %v1918 = vunpack.c.l.b16 %v853
        %v1919 = vunpack.c.l.b16 %v854
        %v1920 = vpack.c.b16 %v1917, %v1916
        %v1921 = vpack.c.b16 %v1919, %v1918
        %v1925 = vsel %vm861, %v1911, 0
        %1927 = vmatprep.subr.bf16.mxu0 0
        %1928 = vmatpush1.bf16.msra.mxu0 %v1920
        %1929 = vmatprep.subr.bf16.mxu0 0
        %1930 = vmatpush1.bf16.msra.mxu0 %v1921
        %1931 = vmatprep.subr.bf16.mxu0 0
        %1932 = vmatpush1.bf16.msra.mxu0 0
        %1933 = vmatprep.subr.bf16.mxu0 0
        %1934 = vmatpush1.bf16.msra.mxu0 0
        %1935 = vmatprep.subr.bf16.mxu0 0
        %1936 = vmatpush1.bf16.msra.mxu0 0
        %1937 = vmatprep.subr.bf16.mxu0 0
        %1938 = vmatpush1.bf16.msra.mxu0 0
        %1939 = vmatprep.subr.bf16.mxu0 0
        %1940 = vmatpush1.bf16.msra.mxu0 0
        %1941 = vmatprep.subr.bf16.mxu0 0
        %1942 = vmatpush1.bf16.msra.mxu0 0
        %1943 = vmatprep.subr.bf16.mxu0 0
        %1944 = vmatpush1.bf16.msra.mxu0 0
        %1945 = vmatprep.subr.bf16.mxu0 0
        %1946 = vmatpush1.bf16.msra.mxu0 0
        %1947 = vmatprep.subr.bf16.mxu0 0
        %1948 = vmatpush1.bf16.msra.mxu0 0
        %1949 = vmatprep.subr.bf16.mxu0 0
        %1950 = vmatpush1.bf16.msra.mxu0 0
        %1951 = vmatprep.subr.bf16.mxu0 0
        %1952 = vmatpush1.bf16.msra.mxu0 0
        %1953 = vmatprep.subr.bf16.mxu0 0
        %1954 = vmatpush1.bf16.msra.mxu0 0
        %1955 = vmatprep.subr.bf16.mxu0 0
        %1956 = vmatpush1.bf16.msra.mxu0 0
        %1957 = vmatprep.subr.bf16.mxu0 0
        %1958 = vmatpush1.bf16.msra.mxu0 0
        %1959 = vmatprep.mubr.bf16.mxu0 0
        %1960 = vmatmul.mubr.bf16.gmra.mrb[0].mxu0 %v1925
        %v1961 = vpop.f32.mrb[0].mxu0
        %v1962 = vadd.f32 0.0, %v1961
        %v1963 = vpop.f32.mrb[0].mxu0
        %v1964 = vpop.f32.mrb[0].mxu0
        %v1965 = vadd.f32 0.0, %v1964
        %v1966 = vpop.f32.mrb[0].mxu0
        %1967 = vdwg.mxu0
        %v1968 = vadd.f32 %v1689, %v1962
        %v1969 = vadd.f32 %v1690, %v1965
        %v1970 = vadd.f32 %v572, %v1968
        %v1971 = vadd.f32 %v573, %v1969
        %v1972 = vlaneseq
        %v1973 = vshrl.u32 %v1972, 7
        %v1974 = vsub.s32 3, %v1973
        %v1975 = vrot.slane %v574, %v1974
        %v1976 = vadd.f32 %v1970, %v1975
        %v1977 = vadd.f32 %v1971, %v1975
        %1978 = vadd.xlane.f32.xlu0 %v1976
        %v1979 = vpop.xlane.xlu0 %1978
        %1980 = vadd.xlane.f32.xlu0 %v1977
        %v1981 = vpop.xlane.xlu0 %1980
        %v1982 = vrcp.pop 128.0
        %v1983 = vmul.f32 %v1979, %v1982
        %v1984 = vmul.f32 %v1981, %v1982
        %v1985 = vsub.f32 %v1976, %v1983
        %v1986 = vsub.f32 %v1977, %v1984
        %v1987 = vmul.f32 %v1985, %v1985
        %v1988 = vmul.f32 %v1986, %v1986
        %1989 = vadd.xlane.f32.xlu0 %v1987
        %v1990 = vpop.xlane.xlu0 %1989
        %1991 = vadd.xlane.f32.xlu0 %v1988
        %v1992 = vpop.xlane.xlu0 %1991
        %v1993 = vmul.f32 %v1990, %v1982
        %v1994 = vmul.f32 %v1992, %v1982
        %v1995 = vadd.f32 %v1993, 1e-12
        %v1996 = vadd.f32 %v1994, 1e-12
        %v1997 = vrsqrt.pop %v1995
        %v1998 = vrsqrt.pop %v1996
        %v1999 = vmul.f32 %v1985, %v1997
        %v2000 = vmul.f32 %v1986, %v1998
        %v2001 = vlaneseq
        %v2002 = vshrl.u32 %v2001, 7
        %v2003 = vsub.s32 4, %v2002
        %v2004 = vrot.slane %v574, %v2003
        %v2005 = vmul.f32 %v1999, %v2004
        %v2006 = vmul.f32 %v2000, %v2004
        %v2007 = vlaneseq
        %v2008 = vshrl.u32 %v2007, 7
        %v2009 = vsub.s32 5, %v2008
        %v2010 = vrot.slane %v574, %v2009
        %v2011 = vadd.f32 %v2005, %v2010
        %v2012 = vadd.f32 %v2006, %v2010
        %v2013 = vpack.c.bf16 %v2012, %v2011
        %v2014 = vld [vmem:[%s426] sm:$0xff]
        %v2015 = vld [vmem:[%s426 + $0x8] sm:$0xff]
        %v2016 = vld [vmem:[%s426 + $0x10] sm:$0xff]
        %v2017 = vld [vmem:[%s426 + $0x18] sm:$0xff]
        %v2018 = vld [vmem:[%s426 + $0x20] sm:$0xff]
        %v2019 = vld [vmem:[%s426 + $0x28] sm:$0xff]
        %v2020 = vld [vmem:[%s426 + $0x30] sm:$0xff]
        %v2021 = vld [vmem:[%s426 + $0x38] sm:$0xff]
        %v2022 = vld [vmem:[%s426 + $0x40] sm:$0xff]
        %v2023 = vld [vmem:[%s426 + $0x48] sm:$0xff]
        %v2024 = vld [vmem:[%s426 + $0x50] sm:$0xff]
        %v2025 = vld [vmem:[%s426 + $0x58] sm:$0xff]
        %v2026 = vld [vmem:[%s426 + $0x60] sm:$0xff]
        %v2027 = vld [vmem:[%s426 + $0x68] sm:$0xff]
        %v2028 = vld [vmem:[%s426 + $0x70] sm:$0xff]
        %v2029 = vld [vmem:[%s426 + $0x78] sm:$0xff]
        %v2030 = vld [vmem:[%s518] sm:$0x3]
        %v2032 = vlaneseq
        %v2033 = vshrl.u32 %v2032, 7
        %v2034 = vsub.s32 0, %v2033
        %v2035 = vrot.slane %v2030, %v2034
        %v2036 = vlaneseq
        %v2037 = vshrl.u32 %v2036, 7
        %v2038 = vsub.s32 1, %v2037
        %v2039 = vrot.slane %v2030, %v2038
        %v2058 = vunpack.c.l.b16 %v2014
        %v2059 = vunpack.c.h.b16 %v2014
        %v2060 = vunpack.c.l.b16 %v2015
        %v2061 = vunpack.c.h.b16 %v2015
        %v2062 = vunpack.c.l.b16 %v2016
        %v2063 = vunpack.c.h.b16 %v2016
        %v2064 = vunpack.c.l.b16 %v2017
        %v2065 = vunpack.c.h.b16 %v2017
        %v2066 = vunpack.c.l.b16 %v2018
        %v2067 = vunpack.c.h.b16 %v2018
        %v2068 = vunpack.c.l.b16 %v2019
        %v2069 = vunpack.c.h.b16 %v2019
        %v2070 = vunpack.c.l.b16 %v2020
        %v2071 = vunpack.c.h.b16 %v2020
        %v2072 = vunpack.c.l.b16 %v2021
        %v2073 = vunpack.c.h.b16 %v2021
        %v2074 = vunpack.c.l.b16 %v2022
        %v2075 = vunpack.c.h.b16 %v2022
        %v2076 = vunpack.c.l.b16 %v2023
        %v2077 = vunpack.c.h.b16 %v2023
        %v2078 = vunpack.c.l.b16 %v2024
        %v2079 = vunpack.c.h.b16 %v2024
        %v2080 = vunpack.c.l.b16 %v2025
        %v2081 = vunpack.c.h.b16 %v2025
        %v2082 = vunpack.c.l.b16 %v2026
        %v2083 = vunpack.c.h.b16 %v2026
        %v2084 = vunpack.c.l.b16 %v2027
        %v2085 = vunpack.c.h.b16 %v2027
        %v2086 = vunpack.c.l.b16 %v2028
        %v2087 = vunpack.c.h.b16 %v2028
        %v2088 = vunpack.c.l.b16 %v2029
        %v2089 = vunpack.c.h.b16 %v2029
        %v2090 = vpack.c.b16 %v2060, %v2058
        %v2091 = vpack.c.b16 %v2061, %v2059
        %v2092 = vpack.c.b16 %v2064, %v2062
        %v2093 = vpack.c.b16 %v2065, %v2063
        %v2094 = vpack.c.b16 %v2068, %v2066
        %v2095 = vpack.c.b16 %v2069, %v2067
        %v2096 = vpack.c.b16 %v2072, %v2070
        %v2097 = vpack.c.b16 %v2073, %v2071
        %v2098 = vpack.c.b16 %v2076, %v2074
        %v2099 = vpack.c.b16 %v2077, %v2075
        %v2100 = vpack.c.b16 %v2080, %v2078
        %v2101 = vpack.c.b16 %v2081, %v2079
        %v2102 = vpack.c.b16 %v2084, %v2082
        %v2103 = vpack.c.b16 %v2085, %v2083
        %v2104 = vpack.c.b16 %v2088, %v2086
        %v2105 = vpack.c.b16 %v2089, %v2087
        %2122 = vmatprep.subr.bf16.mxu0 %v2091
        %2123 = vmatpush1.bf16.msra.mxu0 %v2090
        %2124 = vmatprep.subr.bf16.mxu0 %v2093
        %2125 = vmatpush1.bf16.msra.mxu0 %v2092
        %2126 = vmatprep.subr.bf16.mxu0 %v2095
        %2127 = vmatpush1.bf16.msra.mxu0 %v2094
        %2128 = vmatprep.subr.bf16.mxu0 %v2097
        %2129 = vmatpush1.bf16.msra.mxu0 %v2096
        %2130 = vmatprep.subr.bf16.mxu0 %v2099
        %2131 = vmatpush1.bf16.msra.mxu0 %v2098
        %2132 = vmatprep.subr.bf16.mxu0 %v2101
        %2133 = vmatpush1.bf16.msra.mxu0 %v2100
        %2134 = vmatprep.subr.bf16.mxu0 %v2103
        %2135 = vmatpush1.bf16.msra.mxu0 %v2102
        %2136 = vmatprep.subr.bf16.mxu0 %v2105
        %2137 = vmatpush1.bf16.msra.mxu0 %v2104
        %2138 = vmatprep.subr.bf16.mxu0 0
        %2139 = vmatpush1.bf16.msra.mxu0 0
        %2140 = vmatprep.subr.bf16.mxu0 0
        %2141 = vmatpush1.bf16.msra.mxu0 0
        %2142 = vmatprep.subr.bf16.mxu0 0
        %2143 = vmatpush1.bf16.msra.mxu0 0
        %2144 = vmatprep.subr.bf16.mxu0 0
        %2145 = vmatpush1.bf16.msra.mxu0 0
        %2146 = vmatprep.subr.bf16.mxu0 0
        %2147 = vmatpush1.bf16.msra.mxu0 0
        %2148 = vmatprep.subr.bf16.mxu0 0
        %2149 = vmatpush1.bf16.msra.mxu0 0
        %2150 = vmatprep.subr.bf16.mxu0 0
        %2151 = vmatpush1.bf16.msra.mxu0 0
        %2152 = vmatprep.subr.bf16.mxu0 0
        %2153 = vmatpush1.bf16.msra.mxu0 0
        %2154 = vmatprep.mubr.bf16.mxu0 0
        %2155 = vmatmul.mubr.bf16.gmra.mrb[0].mxu0 %v2013
        %v2156 = vpop.f32.mrb[0].mxu0
        %v2157 = vadd.f32 %v2035, %v2156
        %v2158 = vpop.f32.mrb[0].mxu0
        %v2159 = vadd.f32 %v2039, %v2158
        %v2160 = vpop.f32.mrb[0].mxu0
        %v2161 = vadd.f32 %v2035, %v2160
        %v2162 = vpop.f32.mrb[0].mxu0
        %v2163 = vadd.f32 %v2039, %v2162
        %2164 = vdwg.mxu0
        %v2165 = vmul.f32 %v2157, %v2157
        %v2166 = vmul.f32 %v2159, %v2159
        %v2167 = vmul.f32 %v2161, %v2161
        %v2168 = vmul.f32 %v2163, %v2163
        %v2169 = vmul.f32 %v2157, %v2165
        %v2170 = vmul.f32 %v2159, %v2166
        %v2171 = vmul.f32 %v2161, %v2167
        %v2172 = vmul.f32 %v2163, %v2168
        %v2173 = vmul.f32 %v2169, 0.044715
        %v2174 = vmul.f32 %v2170, 0.044715
        %v2175 = vmul.f32 %v2171, 0.044715
        %v2176 = vmul.f32 %v2172, 0.044715
        %v2177 = vadd.f32 %v2157, %v2173
        %v2178 = vadd.f32 %v2159, %v2174
        %v2179 = vadd.f32 %v2161, %v2175
        %v2180 = vadd.f32 %v2163, %v2176
        %v2181 = vmul.f32 %v2177, 0.7978846
        %v2182 = vmul.f32 %v2178, 0.7978846
        %v2183 = vmul.f32 %v2179, 0.7978846
        %v2184 = vmul.f32 %v2180, 0.7978846
        %v2185 = vtanh.pop %v2181
        %v2186 = vtanh.pop %v2182
        %v2187 = vtanh.pop %v2183
        %v2188 = vtanh.pop %v2184
        %v2189 = vadd.f32 %v2185, 1.0
        %v2190 = vadd.f32 %v2186, 1.0
        %v2191 = vadd.f32 %v2187, 1.0
        %v2192 = vadd.f32 %v2188, 1.0
        %v2193 = vmul.f32 %v2189, 0.5
        %v2194 = vmul.f32 %v2190, 0.5
        %v2195 = vmul.f32 %v2191, 0.5
        %v2196 = vmul.f32 %v2192, 0.5
        %v2197 = vmul.f32 %v2157, %v2193
        %v2198 = vmul.f32 %v2159, %v2194
        %v2199 = vmul.f32 %v2161, %v2195
        %v2200 = vmul.f32 %v2163, %v2196
        %v2201 = vpack.c.bf16 %v2199, %v2197
        %v2202 = vpack.c.bf16 %v2200, %v2198
        %v2203 = vld [vmem:[%s435] sm:$0xf]
        %v2204 = vld [vmem:[%s435 + $0x4] sm:$0xf]
        %v2205 = vld [vmem:[%s435 + $0x8] sm:$0xf]
        %v2206 = vld [vmem:[%s435 + $0xc] sm:$0xf]
        %v2207 = vld [vmem:[%s435 + $0x10] sm:$0xf]
        %v2208 = vld [vmem:[%s435 + $0x14] sm:$0xf]
        %v2209 = vld [vmem:[%s435 + $0x18] sm:$0xf]
        %v2210 = vld [vmem:[%s435 + $0x1c] sm:$0xf]
        %v2211 = vld [vmem:[%s435 + $0x20] sm:$0xf]
        %v2212 = vld [vmem:[%s435 + $0x24] sm:$0xf]
        %v2213 = vld [vmem:[%s435 + $0x28] sm:$0xf]
        %v2214 = vld [vmem:[%s435 + $0x2c] sm:$0xf]
        %v2215 = vld [vmem:[%s435 + $0x30] sm:$0xf]
        %v2216 = vld [vmem:[%s435 + $0x34] sm:$0xf]
        %v2217 = vld [vmem:[%s435 + $0x38] sm:$0xf]
        %v2218 = vld [vmem:[%s435 + $0x3c] sm:$0xf]
        %v2219 = vld [vmem:[%s435 + $0x40] sm:$0xf]
        %v2220 = vld [vmem:[%s435 + $0x44] sm:$0xf]
        %v2221 = vld [vmem:[%s435 + $0x48] sm:$0xf]
        %v2222 = vld [vmem:[%s435 + $0x4c] sm:$0xf]
        %v2223 = vld [vmem:[%s435 + $0x50] sm:$0xf]
        %v2224 = vld [vmem:[%s435 + $0x54] sm:$0xf]
        %v2225 = vld [vmem:[%s435 + $0x58] sm:$0xf]
        %v2226 = vld [vmem:[%s435 + $0x5c] sm:$0xf]
        %v2227 = vld [vmem:[%s435 + $0x60] sm:$0xf]
        %v2228 = vld [vmem:[%s435 + $0x64] sm:$0xf]
        %v2229 = vld [vmem:[%s435 + $0x68] sm:$0xf]
        %v2230 = vld [vmem:[%s435 + $0x6c] sm:$0xf]
        %v2231 = vld [vmem:[%s435 + $0x70] sm:$0xf]
        %v2232 = vld [vmem:[%s435 + $0x74] sm:$0xf]
        %v2233 = vld [vmem:[%s435 + $0x78] sm:$0xf]
        %v2234 = vld [vmem:[%s435 + $0x7c] sm:$0xf]
        %v2267 = vunpack.c.l.b16 %v2203
        %v2268 = vunpack.c.l.b16 %v2204
        %v2269 = vunpack.c.l.b16 %v2205
        %v2270 = vunpack.c.l.b16 %v2206
        %v2271 = vunpack.c.l.b16 %v2207
        %v2272 = vunpack.c.l.b16 %v2208
        %v2273 = vunpack.c.l.b16 %v2209
        %v2274 = vunpack.c.l.b16 %v2210
        %v2275 = vunpack.c.l.b16 %v2211
        %v2276 = vunpack.c.l.b16 %v2212
        %v2277 = vunpack.c.l.b16 %v2213
        %v2278 = vunpack.c.l.b16 %v2214
        %v2279 = vunpack.c.l.b16 %v2215
        %v2280 = vunpack.c.l.b16 %v2216
        %v2281 = vunpack.c.l.b16 %v2217
        %v2282 = vunpack.c.l.b16 %v2218
        %v2283 = vunpack.c.l.b16 %v2219
        %v2284 = vunpack.c.l.b16 %v2220
        %v2285 = vunpack.c.l.b16 %v2221
        %v2286 = vunpack.c.l.b16 %v2222
        %v2287 = vunpack.c.l.b16 %v2223
        %v2288 = vunpack.c.l.b16 %v2224
        %v2289 = vunpack.c.l.b16 %v2225
        %v2290 = vunpack.c.l.b16 %v2226
        %v2291 = vunpack.c.l.b16 %v2227
        %v2292 = vunpack.c.l.b16 %v2228
        %v2293 = vunpack.c.l.b16 %v2229
        %v2294 = vunpack.c.l.b16 %v2230
        %v2295 = vunpack.c.l.b16 %v2231
        %v2296 = vunpack.c.l.b16 %v2232
        %v2297 = vunpack.c.l.b16 %v2233
        %v2298 = vunpack.c.l.b16 %v2234
        %v2299 = vpack.c.b16 %v2268, %v2267
        %v2300 = vpack.c.b16 %v2270, %v2269
        %v2301 = vpack.c.b16 %v2272, %v2271
        %v2302 = vpack.c.b16 %v2274, %v2273
        %v2303 = vpack.c.b16 %v2276, %v2275
        %v2304 = vpack.c.b16 %v2278, %v2277
        %v2305 = vpack.c.b16 %v2280, %v2279
        %v2306 = vpack.c.b16 %v2282, %v2281
        %v2307 = vpack.c.b16 %v2284, %v2283
        %v2308 = vpack.c.b16 %v2286, %v2285
        %v2309 = vpack.c.b16 %v2288, %v2287
        %v2310 = vpack.c.b16 %v2290, %v2289
        %v2311 = vpack.c.b16 %v2292, %v2291
        %v2312 = vpack.c.b16 %v2294, %v2293
        %v2313 = vpack.c.b16 %v2296, %v2295
        %v2314 = vpack.c.b16 %v2298, %v2297
        %2331 = vmatprep.subr.bf16.mxu0 0
        %2332 = vmatpush1.bf16.msra.mxu0 %v2299
        %2333 = vmatprep.subr.bf16.mxu0 0
        %2334 = vmatpush1.bf16.msra.mxu0 %v2300
        %2335 = vmatprep.subr.bf16.mxu0 0
        %2336 = vmatpush1.bf16.msra.mxu0 %v2301
        %2337 = vmatprep.subr.bf16.mxu0 0
        %2338 = vmatpush1.bf16.msra.mxu0 %v2302
        %2339 = vmatprep.subr.bf16.mxu0 0
        %2340 = vmatpush1.bf16.msra.mxu0 %v2303
        %2341 = vmatprep.subr.bf16.mxu0 0
        %2342 = vmatpush1.bf16.msra.mxu0 %v2304
        %2343 = vmatprep.subr.bf16.mxu0 0
        %2344 = vmatpush1.bf16.msra.mxu0 %v2305
        %2345 = vmatprep.subr.bf16.mxu0 0
        %2346 = vmatpush1.bf16.msra.mxu0 %v2306
        %2347 = vmatprep.subr.bf16.mxu0 0
        %2348 = vmatpush1.bf16.msra.mxu0 %v2307
        %2349 = vmatprep.subr.bf16.mxu0 0
        %2350 = vmatpush1.bf16.msra.mxu0 %v2308
        %2351 = vmatprep.subr.bf16.mxu0 0
        %2352 = vmatpush1.bf16.msra.mxu0 %v2309
        %2353 = vmatprep.subr.bf16.mxu0 0
        %2354 = vmatpush1.bf16.msra.mxu0 %v2310
        %2355 = vmatprep.subr.bf16.mxu0 0
        %2356 = vmatpush1.bf16.msra.mxu0 %v2311
        %2357 = vmatprep.subr.bf16.mxu0 0
        %2358 = vmatpush1.bf16.msra.mxu0 %v2312
        %2359 = vmatprep.subr.bf16.mxu0 0
        %2360 = vmatpush1.bf16.msra.mxu0 %v2313
        %2361 = vmatprep.subr.bf16.mxu0 0
        %2362 = vmatpush1.bf16.msra.mxu0 %v2314
        %2363 = vmatprep.mubr.bf16.mxu0 %v2202
        %2364 = vmatmul.mubr.bf16.gmra.mrb[0].mxu0 %v2201
        %v2365 = vpop.f32.mrb[0].mxu0
        %v2366 = vadd.f32 0.0, %v2365
        %v2367 = vpop.f32.mrb[0].mxu0
        %v2368 = vpop.f32.mrb[0].mxu0
        %v2369 = vadd.f32 0.0, %v2368
        %v2370 = vpop.f32.mrb[0].mxu0
        %2371 = vdwg.mxu0
        %v2372 = vadd.f32 %v2011, %v2366
        %v2373 = vadd.f32 %v2012, %v2369
        %v2374 = vlaneseq
        %v2375 = vshrl.u32 %v2374, 7
        %v2376 = vsub.s32 6, %v2375
        %v2377 = vrot.slane %v574, %v2376
        %v2378 = vadd.f32 %v2372, %v2377
        %v2379 = vadd.f32 %v2373, %v2377
        %2380 = vadd.xlane.f32.xlu0 %v2378
        %v2381 = vpop.xlane.xlu0 %2380
        %2382 = vadd.xlane.f32.xlu0 %v2379
        %v2383 = vpop.xlane.xlu0 %2382
        %v2384 = vmul.f32 %v2381, %v1982
        %v2385 = vmul.f32 %v2383, %v1982
        %v2386 = vsub.f32 %v2378, %v2384
        %v2387 = vsub.f32 %v2379, %v2385
        %v2388 = vmul.f32 %v2386, %v2386
        %v2389 = vmul.f32 %v2387, %v2387
        %2390 = vadd.xlane.f32.xlu0 %v2388
        %v2391 = vpop.xlane.xlu0 %2390
        %2392 = vadd.xlane.f32.xlu0 %v2389
        %v2393 = vpop.xlane.xlu0 %2392
        %v2394 = vmul.f32 %v2391, %v1982
        %v2395 = vmul.f32 %v2393, %v1982
        %v2396 = vadd.f32 %v2394, 1e-12
        %v2397 = vadd.f32 %v2395, 1e-12
        %v2398 = vrsqrt.pop %v2396
        %v2399 = vrsqrt.pop %v2397
        %v2400 = vmul.f32 %v2386, %v2398
        %v2401 = vmul.f32 %v2387, %v2399
        %v2402 = vlaneseq
        %v2403 = vshrl.u32 %v2402, 7
        %v2404 = vsub.s32 7, %v2403
        %v2405 = vrot.slane %v574, %v2404
        %v2406 = vmul.f32 %v2400, %v2405
        %v2407 = vmul.f32 %v2401, %v2405
        %v2408 = vlaneseq
        %v2409 = vshrl.u32 %v2408, 7
        %v2410 = vsub.s32 0, %v2409
        %v2411 = vrot.slane %v575, %v2410
        %v2412 = vadd.f32 %v2406, %v2411
        %v2413 = vadd.f32 %v2407, %v2411
        %2414 = vst [vmem:[#allocation2] sm:$0xff] %v2412
        %2415 = vst [vmem:[#allocation2 + $0x8] sm:$0xff] %v2413
        %p2416 = scmp.eq.s32.totalorder %s34, 1
        // Predicated region
        $region73: #{sql_encoder_forward.1} parent=55 // pred_check
          %p2417 = pneg %p2416
        $region74: #{sql_encoder_forward.1} parent=55 // pred_check_branch
          %2419 = sbr.rel (%p2417) target = $region76
        $region75: #{sql_encoder_forward.1} parent=55 // pred_region
          %v2420 = vpack.c.bf16 %v2412, %v2412
          %v2421 = vpack.c.bf16 %v2413, %v2413
          %2422 = vst [vmem:[%s498] sm:$0xf] %v2420
          %2423 = vst [vmem:[%s498 + $0x4] sm:$0xf] %v2421
        $region76: #{sql_encoder_forward.1} parent=55 // pred_fallthru
          _
        %s2424 = sand.u32 %s273, 1
        %s2425 = scalar_lea.sflag [#allocation5], %s2424
        %s2426 = sand.u32 %s273, 1
        %s2427 = smul.addr %s2426, 8
        %s2428 = scalar_lea.vmem [#allocation9], %s2427
        // Predicated region
        $region77: #{sql_encoder_forward.1} parent=55 // pred_check
          %p2429 = pneg %p283
        $region78: #{sql_encoder_forward.1} parent=55 // pred_check_branch
          %2431 = sbr.rel (%p2429) target = $region80
        $region79: #{sql_encoder_forward.1} parent=55 // pred_region
          %s2432 = smul.u32 2, %s33
          %s2434 = ssub.s32 128, 128
          %2435 = vsyncadd %s2425, %s2434
          %s2436 = smul.addr %s2432, 64
          %s2437 = scalar_lea.hbm %s9, %s2436
          %s2438 = sshll.u32 %s2428, 4
          %s2439 = int_to_ptr.vmem [resolvable:$true] %s2438
          %2444 = dma.vmem_to_hbm [thread:$0]  %s2439, 128, %s2437, %s2425, 64, 64, 4
        $region80: #{sql_encoder_forward.1} parent=55 // pred_fallthru
          _
      $region56: #{sql_encoder_forward.1} parent=5 // pred_fallthru
        _
      %p2445 = scmp.le.s32.totalorder 2, %s24
      // Predicated region
      $region81: #{sql_encoder_forward.1} parent=5 // pred_check
        %p2446 = pneg %p2445
      $region82: #{sql_encoder_forward.1} parent=5 // pred_check_branch
        %2448 = sbr.rel (%p2446) target = $region84
      $region83: #{sql_encoder_forward.1} parent=5 // pred_region
        %s2449 = ssub.s32 %s24, 2
        // Predicated region
        $region85: #{sql_encoder_forward.1} parent=83 // pred_check
          %p2450 = pneg %p289
        $region86: #{sql_encoder_forward.1} parent=83 // pred_check_branch
          %2452 = sbr.rel (%p2450) target = $region88
        $region87: #{sql_encoder_forward.1} parent=83 // pred_region
          %s2453 = sand.u32 %s274, 1
          %s2454 = scalar_lea.sflag [#allocation5], %s2453
          %s2455 = sand.u32 %s274, 1
          %s2456 = smul.addr %s2455, 8
          %s2457 = scalar_lea.vmem [#allocation9], %s2456
          %2458 = dma.done %s2454, 128
        $region88: #{sql_encoder_forward.1} parent=83 // pred_fallthru
          _
      $region84: #{sql_encoder_forward.1} parent=5 // pred_fallthru
        _
    $region6: #{sql_encoder_forward.1} parent=1 // loop_footer
      %s28 = sadd.s32 1, %s24
    $region7: #{sql_encoder_forward.1} parent=1 // loop_footer_branch
      %23 = sbr.rel target = $region3
    $region8: #{sql_encoder_forward.1} parent=1 // loop_exit
      _
    %2459 = vsyncpa [#allocation4], 1
    %s2460 = scalar_lea.sflag [#allocation4], 1
    %2461 = vsyncpa %s2460, 1
    %2462 = vsyncpa [#allocation7], 1
    %s2463 = scalar_lea.sflag [#allocation7], 1
    %2464 = vsyncpa %s2463, 1
    %2465 = vsyncpa [#allocation5], 1
    %s2466 = scalar_lea.sflag [#allocation5], 1
    %2467 = vsyncpa %s2466, 1

</llo_original>
